<compile_context>
chip_gen: v7x
topology: tpu7x:2x2x1
jax: 0.10.0
libtpu: 0.0.40
codegen_flags: <defaults>
</compile_context>

<pallas_src>
import jax
import jax.numpy as jnp
from jax.experimental import pallas as pl
from jax.experimental.pallas import tpu as pltpu

EMB_DIM = 300          # self.embedding_dims
HIDDEN = 32            # args.hidden_size
END_TOKEN = 39         # vocab = end_token + 1 = 40
VOCAB = END_TOKEN + 1
V_PAD = 128            # vocab padded to one full lane width
BATCH = 2
SEQ = 8


# ------------------------------ Fused kernel ---------------------------------
def fused_forward_kernel(ids_ref, emb_gates_ref, w_big_ref, b1_ref,
                         head_w_ref, head_b_ref, h0_ref, c0_ref,
                         probs_ref, hN_ref, cN_ref, out2_scratch):
    f32 = jnp.float32
    B = h0_ref.shape[1]
    H = h0_ref.shape[2]
    TB = ids_ref.shape[0]
    T = TB // B
    G = 4 * H                        # per-layer gate width (128)
    VP = emb_gates_ref.shape[0]      # vocab rows padded to 128

    def sigmoid(x):                  # explicit form -> exp on EUP, recip/VPU
        return 1.0 / (1.0 + jnp.exp(-x))

    def lstm_cell(gates, c):         # PyTorch gate order: i, f, g, o
        i_g = sigmoid(gates[:, 0 * H:1 * H])
        f_g = sigmoid(gates[:, 1 * H:2 * H])
        g_g = jnp.tanh(gates[:, 2 * H:3 * H])
        o_g = sigmoid(gates[:, 3 * H:4 * H])
        c_new = f_g * c + i_g * g_g
        h_new = o_g * jnp.tanh(c_new)
        return h_new, c_new

    # ---- Hoisted (off the recurrent chain): embedding∘W_ih0 fold as a
    #      one-hot matmul against the (128, 128) emb_gates table. ----
    ids = ids_ref[...]                                                    # (TB, 1)
    onehot = (ids == jax.lax.broadcasted_iota(jnp.int32, (TB, VP), 1)).astype(f32)
    gx0_all = jnp.dot(onehot, emb_gates_ref[...],
                      preferred_element_type=f32)                         # (TB, G)
    gx0_steps = [gx0_all[t * B:(t + 1) * B, :] for t in range(T)]          # hoisted

    w_big = w_big_ref[...]           # (2H, 2G) wavefront recurrent matrix
    b1 = b1_ref[...]                 # (1, G)   layer-1 fused bias

    h0 = h0_ref[0]                   # layer-0 state (B, H)
    c0 = c0_ref[0]
    h1 = h0_ref[1]                   # layer-1 state (B, H)
    c1 = c0_ref[1]

    # ---- Wavefront recurrence: global step s runs layer-0 timestep s (s<T)
    #      and layer-1 timestep s-1 (s>=1).  One MXU matmul per global step. ----
    for s in range(T + 1):           # T static -> fully unrolled
        hc = jnp.concatenate([h0, h1], axis=-1)                           # (B, 2H)
        rec = jnp.dot(hc, w_big, preferred_element_type=f32)              # (B, 2G)
        if s >= 1:                   # layer-1, timestep s-1
            h1, c1 = lstm_cell(rec[:, G:2 * G] + b1, c1)
            r0 = (s - 1) * B
            out2_scratch[r0:r0 + B, :] = h1      # staged for the batched head
        if s < T:                    # layer-0, timestep s
            h0, c0 = lstm_cell(rec[:, 0:G] + gx0_steps[s], c0)

    # ---- Folded head: fc1 ∘ fc2 ∘ emb^T as a single (TB,H)x(H,V_PAD) matmul.
    #      (torch's '+1e-16' pre-softmax is a constant shift -> no-op, dropped.)
    out2_all = out2_scratch[...]                                           # (TB, H)
    logits = jnp.dot(out2_all, head_w_ref[...],
                     preferred_element_type=f32) + head_b_ref[...]         # (TB, V_PAD)
    col = jax.lax.broadcasted_iota(jnp.int32, logits.shape, 1)
    logits = jnp.where(col < VOCAB, logits, jnp.finfo(f32).min)
    m = jnp.max(logits, axis=-1, keepdims=True)
    e = jnp.exp(logits - m)
    probs_ref[...] = e / jnp.sum(e, axis=-1, keepdims=True)

    hN_ref[0] = h0
    hN_ref[1] = h1
    cN_ref[0] = c0
    cN_ref[1] = c1


# --------------------------- Parameter preparation ----------------------------
def prepare_params(p):
    """One-time exact algebraic folds / transposes / padding (not per call)."""
    H = HIDDEN
    emb = p["embedding"]                                                   # (V, E)

    # embedding ∘ W_ih^(0) fold (+ both layer-0 biases): (VOCAB, 4H) -> (V_PAD, 4H)
    emb_gates = emb @ p["w_ih_l0"].T + (p["b_ih_l0"] + p["b_hh_l0"])[None, :]
    emb_gates = jnp.pad(emb_gates, ((0, V_PAD - VOCAB), (0, 0)))

    # Wavefront recurrent matrix (2H, 8H): [[W_hh0.T, W_ih1.T], [0, W_hh1.T]]
    w_big = jnp.zeros((2 * H, 8 * H), jnp.float32)
    w_big = w_big.at[0:H, 0:4 * H].set(p["w_hh_l0"].T)
    w_big = w_big.at[0:H, 4 * H:8 * H].set(p["w_ih_l1"].T)
    w_big = w_big.at[H:2 * H, 4 * H:8 * H].set(p["w_hh_l1"].T)

    b1 = (p["b_ih_l1"] + p["b_hh_l1"]).reshape(1, 4 * H)

    # Head fold (head is purely linear in the torch model):
    # logits = out @ (fc1_w.T fc2_w.T emb.T) + (fc1_b fc2_w.T + fc2_b) emb.T
    head_w = p["fc1_w"].T @ p["fc2_w"].T @ emb.T                            # (H, V)
    head_b = (p["fc1_b"] @ p["fc2_w"].T + p["fc2_b"]) @ emb.T               # (V,)
    head_w = jnp.pad(head_w, ((0, 0), (0, V_PAD - VOCAB)))
    head_b = jnp.pad(head_b, (0, V_PAD - VOCAB)).reshape(1, V_PAD)

    return dict(emb_gates=emb_gates, w_big=w_big, b1=b1,
                head_w=head_w, head_b=head_b)


# -------------------------------- Forward ------------------------------------
@jax.jit
def forward(prepped, ids, h0, c0):
    # ids: (B, T) int32; h0/c0: (2, B, H).  PackedSequence row order for
    # equal-length sequences is time-major: row = t*B + b.
    B, T = ids.shape
    TB = T * B
    ids_tm = ids.T.reshape(TB, 1).astype(jnp.int32)

    vmem = pl.BlockSpec(memory_space=pltpu.MemorySpace.VMEM)
    probs_pad, hN, cN = pl.pallas_call(
        fused_forward_kernel,
        out_shape=(jax.ShapeDtypeStruct((TB, V_PAD), jnp.float32),
                   jax.ShapeDtypeStruct((2, B, HIDDEN), jnp.float32),
                   jax.ShapeDtypeStruct((2, B, HIDDEN), jnp.float32)),
        in_specs=[vmem] * 8,
        out_specs=(vmem, vmem, vmem),
        scratch_shapes=[pltpu.VMEM((TB, HIDDEN), jnp.float32)],
    )(ids_tm, prepped["emb_gates"], prepped["w_big"], prepped["b1"],
      prepped["head_w"], prepped["head_b"], h0, c0)

    return probs_pad[:, :VOCAB], (hN, cN)


# -------------------------- Pure-JAX reference (torch semantics) -------------
def reference_forward(params, ids, h0, c0):
    emb = params["embedding"]
    B, T = ids.shape
    x = emb[ids]                                                           # (B,T,E)

    def lstm_layer(x_seq, w_ih, w_hh, b_ih, b_hh, h, c):
        outs = []
        for t in range(x_seq.shape[1]):
            g = x_seq[:, t] @ w_ih.T + b_ih + h @ w_hh.T + b_hh
            i, f, gg, o = jnp.split(g, 4, axis=-1)
            i = jax.nn.sigmoid(i); f = jax.nn.sigmoid(f)
            gg = jnp.tanh(gg); o = jax.nn.sigmoid(o)
            c = f * c + i * gg
            h = o * jnp.tanh(c)
            outs.append(h)
        return jnp.stack(outs, axis=1), h, c

    out0, h0f, c0f = lstm_layer(x, params["w_ih_l0"], params["w_hh_l0"],
                                params["b_ih_l0"], params["b_hh_l0"], h0[0], c0[0])
    out1, h1f, c1f = lstm_layer(out0, params["w_ih_l1"], params["w_hh_l1"],
                                params["b_ih_l1"], params["b_hh_l1"], h0[1], c0[1])
    flat = out1.transpose(1, 0, 2).reshape(T * B, -1)     # packed (time-major)
    y = flat @ params["fc1_w"].T + params["fc1_b"]
    y = y @ params["fc2_w"].T + params["fc2_b"]
    logits = y @ emb.T
    probs = jax.nn.softmax(logits + 1e-16, axis=1)
    return probs, jnp.stack([h0f, h1f]), jnp.stack([c0f, c1f])


# ------------------------------ Parameter init --------------------------------
def init_params(key):
    ks = jax.random.split(key, 16)

    def xavier(k, shape):
        fan_out, fan_in = shape
        std = (2.0 / (fan_in + fan_out)) ** 0.5
        return std * jax.random.normal(k, shape, jnp.float32)

    emb = jax.random.normal(ks[0], (VOCAB, EMB_DIM), jnp.float32)
    emb = emb.at[0].set(0.0)                            # padding_idx=0

    def lstm_bias(k):
        b = 0.05 * jax.random.normal(k, (4 * HIDDEN,), jnp.float32)
        return b.at[HIDDEN:2 * HIDDEN].set(1.0)          # forget-gate bias = 1.0

    return dict(
        embedding=emb,
        w_ih_l0=xavier(ks[1], (4 * HIDDEN, EMB_DIM)),
        w_hh_l0=xavier(ks[2], (4 * HIDDEN, HIDDEN)),
        b_ih_l0=lstm_bias(ks[3]),
        b_hh_l0=lstm_bias(ks[4]),
        w_ih_l1=xavier(ks[5], (4 * HIDDEN, HIDDEN)),
        w_hh_l1=xavier(ks[6], (4 * HIDDEN, HIDDEN)),
        b_ih_l1=lstm_bias(ks[7]),
        b_hh_l1=lstm_bias(ks[8]),
        fc1_w=xavier(ks[9], (HIDDEN, HIDDEN)),
        fc1_b=0.05 * jax.random.normal(ks[10], (HIDDEN,), jnp.float32),
        fc2_w=xavier(ks[11], (EMB_DIM, HIDDEN)),
        fc2_b=0.05 * jax.random.normal(ks[12], (EMB_DIM,), jnp.float32),
    )


if __name__ == "__main__":
    key = jax.random.PRNGKey(0)
    pkey, ikey, hkey, ckey = jax.random.split(key, 4)

    params = init_params(pkey)
    ids = jax.random.randint(ikey, (BATCH, SEQ), 1, VOCAB, dtype=jnp.int32)
    h0 = 0.1 * jax.random.normal(hkey, (2, BATCH, HIDDEN), jnp.float32)
    c0 = 0.1 * jax.random.normal(ckey, (2, BATCH, HIDDEN), jnp.float32)

    with jax.default_matmul_precision("float32"):
        prepped = prepare_params(params)                 # one-time exact folds
        probs_gold, hN_gold, cN_gold = reference_forward(params, ids, h0, c0)

    probs, (hN, cN) = forward(prepped, ids, h0, c0)
    jax.block_until_ready((probs, hN, cN))

    assert probs.shape == (BATCH * SEQ, VOCAB)
    assert hN.shape == (2, BATCH, HIDDEN) and cN.shape == (2, BATCH, HIDDEN)
    row_sums = jnp.sum(probs, axis=-1)
    assert bool(jnp.all(jnp.abs(row_sums - 1.0) < 1e-4)), "softmax rows must sum to 1"
    assert bool(jnp.all(jnp.isfinite(probs)))
    assert bool(jnp.all(jnp.isfinite(hN))) and bool(jnp.all(jnp.isfinite(cN)))
    # Numerics vs. pure-JAX reference of the torch module (eval mode).
    assert bool(jnp.max(jnp.abs(probs - probs_gold)) < 5e-3), "probs mismatch"
    assert bool(jnp.max(jnp.abs(hN - hN_gold)) < 5e-3), "h_n mismatch"
    assert bool(jnp.max(jnp.abs(cN - cN_gold)) < 5e-3), "c_n mismatch"

    print("KERNEL_OK")
</pallas_src>

<mosaic_0001>
module attributes {stable_mosaic.version = 11 : i64} {
  func.func @fused_forward_kernel(%arg0: memref<16x1xi32, #tpu.memory_space<vmem>>, %arg1: memref<128x128xf32, #tpu.memory_space<vmem>>, %arg2: memref<64x256xf32, #tpu.memory_space<vmem>>, %arg3: memref<1x128xf32, #tpu.memory_space<vmem>>, %arg4: memref<32x128xf32, #tpu.memory_space<vmem>>, %arg5: memref<1x128xf32, #tpu.memory_space<vmem>>, %arg6: memref<2x2x32xf32, #tpu.memory_space<vmem>>, %arg7: memref<2x2x32xf32, #tpu.memory_space<vmem>>, %arg8: memref<16x128xf32, #tpu.memory_space<vmem>>, %arg9: memref<2x2x32xf32, #tpu.memory_space<vmem>>, %arg10: memref<2x2x32xf32, #tpu.memory_space<vmem>>, %arg11: memref<16x32xf32, #tpu.memory_space<vmem>>) attributes {dimension_semantics = [], scalar_prefetch = 0 : i64, scratch_operands = 1 : i64, tpu.core_type = #tpu.core_type<tc>} {
    %c0 = arith.constant 0 : index
    %c0_0 = arith.constant 0 : index
    %0 = vector.load %arg0[%c0, %c0_0] : memref<16x1xi32, #tpu.memory_space<vmem>>, vector<16x1xi32>
    %1 = tpu.iota {dimensions = array<i32: 1>} : vector<16x128xi32>
    %2 = vector.broadcast %0 : vector<16x1xi32> to vector<16x128xi32>
    %3 = arith.cmpi eq, %2, %1 : vector<16x128xi32>
    %4 = arith.extui %3 : vector<16x128xi1> to vector<16x128xi32>
    %5 = arith.sitofp %4 : vector<16x128xi32> to vector<16x128xf32>
    %c0_1 = arith.constant 0 : index
    %c0_2 = arith.constant 0 : index
    %6 = vector.load %arg1[%c0_1, %c0_2] : memref<128x128xf32, #tpu.memory_space<vmem>>, vector<128x128xf32>
    %cst = arith.constant dense<0.000000e+00> : vector<16x128xf32>
    %7 = tpu.matmul %5, %6, %cst {dimension_numbers = #tpu.dot_dimension_numbers<[1], [0], [0], [1], [0, 0, 1, 1], [], []>} : vector<16x128xf32>, vector<128x128xf32>, vector<16x128xf32> -> vector<16x128xf32>
    %8 = vector.extract_strided_slice %7 {offsets = [0, 0], sizes = [2, 128], strides = [1, 1]} : vector<16x128xf32> to vector<2x128xf32>
    %9 = vector.extract_strided_slice %7 {offsets = [2, 0], sizes = [2, 128], strides = [1, 1]} : vector<16x128xf32> to vector<2x128xf32>
    %10 = vector.extract_strided_slice %7 {offsets = [4, 0], sizes = [2, 128], strides = [1, 1]} : vector<16x128xf32> to vector<2x128xf32>
    %11 = vector.extract_strided_slice %7 {offsets = [6, 0], sizes = [2, 128], strides = [1, 1]} : vector<16x128xf32> to vector<2x128xf32>
    %12 = vector.extract_strided_slice %7 {offsets = [8, 0], sizes = [2, 128], strides = [1, 1]} : vector<16x128xf32> to vector<2x128xf32>
    %13 = vector.extract_strided_slice %7 {offsets = [10, 0], sizes = [2, 128], strides = [1, 1]} : vector<16x128xf32> to vector<2x128xf32>
    %14 = vector.extract_strided_slice %7 {offsets = [12, 0], sizes = [2, 128], strides = [1, 1]} : vector<16x128xf32> to vector<2x128xf32>
    %15 = vector.extract_strided_slice %7 {offsets = [14, 0], sizes = [2, 128], strides = [1, 1]} : vector<16x128xf32> to vector<2x128xf32>
    %c0_3 = arith.constant 0 : index
    %c0_4 = arith.constant 0 : index
    %16 = vector.load %arg2[%c0_3, %c0_4] : memref<64x256xf32, #tpu.memory_space<vmem>>, vector<64x256xf32>
    %c0_5 = arith.constant 0 : index
    %c0_6 = arith.constant 0 : index
    %17 = vector.load %arg3[%c0_5, %c0_6] : memref<1x128xf32, #tpu.memory_space<vmem>>, vector<1x128xf32>
    %c0_7 = arith.constant 0 : index
    %c0_8 = arith.constant 0 : index
    %c0_9 = arith.constant 0 : index
    %18 = vector.load %arg6[%c0_7, %c0_8, %c0_9] : memref<2x2x32xf32, #tpu.memory_space<vmem>>, vector<1x2x32xf32>
    %19 = vector.shape_cast %18 : vector<1x2x32xf32> to vector<2x32xf32>
    %c0_10 = arith.constant 0 : index
    %c0_11 = arith.constant 0 : index
    %c0_12 = arith.constant 0 : index
    %20 = vector.load %arg7[%c0_10, %c0_11, %c0_12] : memref<2x2x32xf32, #tpu.memory_space<vmem>>, vector<1x2x32xf32>
    %21 = vector.shape_cast %20 : vector<1x2x32xf32> to vector<2x32xf32>
    %c1 = arith.constant 1 : index
    %c0_13 = arith.constant 0 : index
    %c0_14 = arith.constant 0 : index
    %22 = vector.load %arg6[%c1, %c0_13, %c0_14] : memref<2x2x32xf32, #tpu.memory_space<vmem>>, vector<1x2x32xf32>
    %23 = vector.shape_cast %22 : vector<1x2x32xf32> to vector<2x32xf32>
    %c1_15 = arith.constant 1 : index
    %c0_16 = arith.constant 0 : index
    %c0_17 = arith.constant 0 : index
    %24 = vector.load %arg7[%c1_15, %c0_16, %c0_17] : memref<2x2x32xf32, #tpu.memory_space<vmem>>, vector<1x2x32xf32>
    %25 = vector.shape_cast %24 : vector<1x2x32xf32> to vector<2x32xf32>
    %26 = tpu.concatenate %19, %23 in 1 : vector<2x32xf32>, vector<2x32xf32> -> vector<2x64xf32>
    %cst_18 = arith.constant dense<0.000000e+00> : vector<2x256xf32>
    %27 = tpu.matmul %26, %16, %cst_18 {dimension_numbers = #tpu.dot_dimension_numbers<[1], [0], [0], [1], [0, 0, 1, 1], [], []>} : vector<2x64xf32>, vector<64x256xf32>, vector<2x256xf32> -> vector<2x256xf32>
    %28 = vector.extract_strided_slice %27 {offsets = [0, 0], sizes = [2, 128], strides = [1, 1]} : vector<2x256xf32> to vector<2x128xf32>
    %29 = arith.addf %28, %8 : vector<2x128xf32>
    %30 = vector.extract_strided_slice %29 {offsets = [0, 0], sizes = [2, 32], strides = [1, 1]} : vector<2x128xf32> to vector<2x32xf32>
    %cst_19 = arith.constant 0.000000e+00 : f32
    %31 = vector.broadcast %cst_19 : f32 to vector<2x32xf32>
    %32 = arith.subf %31, %30 : vector<2x32xf32>
    %33 = math.exp %32 : vector<2x32xf32>
    %cst_20 = arith.constant 1.000000e+00 : f32
    %34 = vector.broadcast %cst_20 : f32 to vector<2x32xf32>
    %35 = arith.addf %34, %33 : vector<2x32xf32>
    %cst_21 = arith.constant 1.000000e+00 : f32
    %36 = vector.broadcast %cst_21 : f32 to vector<2x32xf32>
    %37 = arith.divf %36, %35 : vector<2x32xf32>
    %38 = vector.extract_strided_slice %29 {offsets = [0, 32], sizes = [2, 32], strides = [1, 1]} : vector<2x128xf32> to vector<2x32xf32>
    %cst_22 = arith.constant 0.000000e+00 : f32
    %39 = vector.broadcast %cst_22 : f32 to vector<2x32xf32>
    %40 = arith.subf %39, %38 : vector<2x32xf32>
    %41 = math.exp %40 : vector<2x32xf32>
    %cst_23 = arith.constant 1.000000e+00 : f32
    %42 = vector.broadcast %cst_23 : f32 to vector<2x32xf32>
    %43 = arith.addf %42, %41 : vector<2x32xf32>
    %cst_24 = arith.constant 1.000000e+00 : f32
    %44 = vector.broadcast %cst_24 : f32 to vector<2x32xf32>
    %45 = arith.divf %44, %43 : vector<2x32xf32>
    %46 = vector.extract_strided_slice %29 {offsets = [0, 64], sizes = [2, 32], strides = [1, 1]} : vector<2x128xf32> to vector<2x32xf32>
    %47 = math.tanh %46 : vector<2x32xf32>
    %48 = vector.extract_strided_slice %29 {offsets = [0, 96], sizes = [2, 32], strides = [1, 1]} : vector<2x128xf32> to vector<2x32xf32>
    %cst_25 = arith.constant 0.000000e+00 : f32
    %49 = vector.broadcast %cst_25 : f32 to vector<2x32xf32>
    %50 = arith.subf %49, %48 : vector<2x32xf32>
    %51 = math.exp %50 : vector<2x32xf32>
    %cst_26 = arith.constant 1.000000e+00 : f32
    %52 = vector.broadcast %cst_26 : f32 to vector<2x32xf32>
    %53 = arith.addf %52, %51 : vector<2x32xf32>
    %cst_27 = arith.constant 1.000000e+00 : f32
    %54 = vector.broadcast %cst_27 : f32 to vector<2x32xf32>
    %55 = arith.divf %54, %53 : vector<2x32xf32>
    %56 = arith.mulf %45, %21 : vector<2x32xf32>
    %57 = arith.mulf %37, %47 : vector<2x32xf32>
    %58 = arith.addf %56, %57 : vector<2x32xf32>
    %59 = math.tanh %58 : vector<2x32xf32>
    %60 = arith.mulf %55, %59 : vector<2x32xf32>
    %61 = tpu.concatenate %60, %23 in 1 : vector<2x32xf32>, vector<2x32xf32> -> vector<2x64xf32>
    %cst_28 = arith.constant dense<0.000000e+00> : vector<2x256xf32>
    %62 = tpu.matmul %61, %16, %cst_28 {dimension_numbers = #tpu.dot_dimension_numbers<[1], [0], [0], [1], [0, 0, 1, 1], [], []>} : vector<2x64xf32>, vector<64x256xf32>, vector<2x256xf32> -> vector<2x256xf32>
    %63 = vector.extract_strided_slice %62 {offsets = [0, 128], sizes = [2, 128], strides = [1, 1]} : vector<2x256xf32> to vector<2x128xf32>
    %64 = vector.broadcast %17 : vector<1x128xf32> to vector<2x128xf32>
    %65 = arith.addf %63, %64 : vector<2x128xf32>
    %66 = vector.extract_strided_slice %65 {offsets = [0, 0], sizes = [2, 32], strides = [1, 1]} : vector<2x128xf32> to vector<2x32xf32>
    %cst_29 = arith.constant 0.000000e+00 : f32
    %67 = vector.broadcast %cst_29 : f32 to vector<2x32xf32>
    %68 = arith.subf %67, %66 : vector<2x32xf32>
    %69 = math.exp %68 : vector<2x32xf32>
    %cst_30 = arith.constant 1.000000e+00 : f32
    %70 = vector.broadcast %cst_30 : f32 to vector<2x32xf32>
    %71 = arith.addf %70, %69 : vector<2x32xf32>
    %cst_31 = arith.constant 1.000000e+00 : f32
    %72 = vector.broadcast %cst_31 : f32 to vector<2x32xf32>
    %73 = arith.divf %72, %71 : vector<2x32xf32>
    %74 = vector.extract_strided_slice %65 {offsets = [0, 32], sizes = [2, 32], strides = [1, 1]} : vector<2x128xf32> to vector<2x32xf32>
    %cst_32 = arith.constant 0.000000e+00 : f32
    %75 = vector.broadcast %cst_32 : f32 to vector<2x32xf32>
    %76 = arith.subf %75, %74 : vector<2x32xf32>
    %77 = math.exp %76 : vector<2x32xf32>
    %cst_33 = arith.constant 1.000000e+00 : f32
    %78 = vector.broadcast %cst_33 : f32 to vector<2x32xf32>
    %79 = arith.addf %78, %77 : vector<2x32xf32>
    %cst_34 = arith.constant 1.000000e+00 : f32
    %80 = vector.broadcast %cst_34 : f32 to vector<2x32xf32>
    %81 = arith.divf %80, %79 : vector<2x32xf32>
    %82 = vector.extract_strided_slice %65 {offsets = [0, 64], sizes = [2, 32], strides = [1, 1]} : vector<2x128xf32> to vector<2x32xf32>
    %83 = math.tanh %82 : vector<2x32xf32>
    %84 = vector.extract_strided_slice %65 {offsets = [0, 96], sizes = [2, 32], strides = [1, 1]} : vector<2x128xf32> to vector<2x32xf32>
    %cst_35 = arith.constant 0.000000e+00 : f32
    %85 = vector.broadcast %cst_35 : f32 to vector<2x32xf32>
    %86 = arith.subf %85, %84 : vector<2x32xf32>
    %87 = math.exp %86 : vector<2x32xf32>
    %cst_36 = arith.constant 1.000000e+00 : f32
    %88 = vector.broadcast %cst_36 : f32 to vector<2x32xf32>
    %89 = arith.addf %88, %87 : vector<2x32xf32>
    %cst_37 = arith.constant 1.000000e+00 : f32
    %90 = vector.broadcast %cst_37 : f32 to vector<2x32xf32>
    %91 = arith.divf %90, %89 : vector<2x32xf32>
    %92 = arith.mulf %81, %25 : vector<2x32xf32>
    %93 = arith.mulf %73, %83 : vector<2x32xf32>
    %94 = arith.addf %92, %93 : vector<2x32xf32>
    %95 = math.tanh %94 : vector<2x32xf32>
    %96 = arith.mulf %91, %95 : vector<2x32xf32>
    %c0_38 = arith.constant 0 : index
    %c0_39 = arith.constant 0 : index
    %97 = vector.load %arg11[%c0_38, %c0_39] : memref<16x32xf32, #tpu.memory_space<vmem>>, vector<2x32xf32>
    tpu.vector_store %arg11[%c0_38, %c0_39], %96 {strides = array<i32>} : memref<16x32xf32, #tpu.memory_space<vmem>>, vector<2x32xf32>,
    %98 = vector.extract_strided_slice %62 {offsets = [0, 0], sizes = [2, 128], strides = [1, 1]} : vector<2x256xf32> to vector<2x128xf32>
    %99 = arith.addf %98, %9 : vector<2x128xf32>
    %100 = vector.extract_strided_slice %99 {offsets = [0, 0], sizes = [2, 32], strides = [1, 1]} : vector<2x128xf32> to vector<2x32xf32>
    %cst_40 = arith.constant 0.000000e+00 : f32
    %101 = vector.broadcast %cst_40 : f32 to vector<2x32xf32>
    %102 = arith.subf %101, %100 : vector<2x32xf32>
    %103 = math.exp %102 : vector<2x32xf32>
    %cst_41 = arith.constant 1.000000e+00 : f32
    %104 = vector.broadcast %cst_41 : f32 to vector<2x32xf32>
    %105 = arith.addf %104, %103 : vector<2x32xf32>
    %cst_42 = arith.constant 1.000000e+00 : f32
    %106 = vector.broadcast %cst_42 : f32 to vector<2x32xf32>
    %107 = arith.divf %106, %105 : vector<2x32xf32>
    %108 = vector.extract_strided_slice %99 {offsets = [0, 32], sizes = [2, 32], strides = [1, 1]} : vector<2x128xf32> to vector<2x32xf32>
    %cst_43 = arith.constant 0.000000e+00 : f32
    %109 = vector.broadcast %cst_43 : f32 to vector<2x32xf32>
    %110 = arith.subf %109, %108 : vector<2x32xf32>
    %111 = math.exp %110 : vector<2x32xf32>
    %cst_44 = arith.constant 1.000000e+00 : f32
    %112 = vector.broadcast %cst_44 : f32 to vector<2x32xf32>
    %113 = arith.addf %112, %111 : vector<2x32xf32>
    %cst_45 = arith.constant 1.000000e+00 : f32
    %114 = vector.broadcast %cst_45 : f32 to vector<2x32xf32>
    %115 = arith.divf %114, %113 : vector<2x32xf32>
    %116 = vector.extract_strided_slice %99 {offsets = [0, 64], sizes = [2, 32], strides = [1, 1]} : vector<2x128xf32> to vector<2x32xf32>
    %117 = math.tanh %116 : vector<2x32xf32>
    %118 = vector.extract_strided_slice %99 {offsets = [0, 96], sizes = [2, 32], strides = [1, 1]} : vector<2x128xf32> to vector<2x32xf32>
    %cst_46 = arith.constant 0.000000e+00 : f32
    %119 = vector.broadcast %cst_46 : f32 to vector<2x32xf32>
    %120 = arith.subf %119, %118 : vector<2x32xf32>
    %121 = math.exp %120 : vector<2x32xf32>
    %cst_47 = arith.constant 1.000000e+00 : f32
    %122 = vector.broadcast %cst_47 : f32 to vector<2x32xf32>
    %123 = arith.addf %122, %121 : vector<2x32xf32>
    %cst_48 = arith.constant 1.000000e+00 : f32
    %124 = vector.broadcast %cst_48 : f32 to vector<2x32xf32>
    %125 = arith.divf %124, %123 : vector<2x32xf32>
    %126 = arith.mulf %115, %58 : vector<2x32xf32>
    %127 = arith.mulf %107, %117 : vector<2x32xf32>
    %128 = arith.addf %126, %127 : vector<2x32xf32>
    %129 = math.tanh %128 : vector<2x32xf32>
    %130 = arith.mulf %125, %129 : vector<2x32xf32>
    %131 = tpu.concatenate %130, %96 in 1 : vector<2x32xf32>, vector<2x32xf32> -> vector<2x64xf32>
    %cst_49 = arith.constant dense<0.000000e+00> : vector<2x256xf32>
    %132 = tpu.matmul %131, %16, %cst_49 {dimension_numbers = #tpu.dot_dimension_numbers<[1], [0], [0], [1], [0, 0, 1, 1], [], []>} : vector<2x64xf32>, vector<64x256xf32>, vector<2x256xf32> -> vector<2x256xf32>
    %133 = vector.extract_strided_slice %132 {offsets = [0, 128], sizes = [2, 128], strides = [1, 1]} : vector<2x256xf32> to vector<2x128xf32>
    %134 = vector.broadcast %17 : vector<1x128xf32> to vector<2x128xf32>
    %135 = arith.addf %133, %134 : vector<2x128xf32>
    %136 = vector.extract_strided_slice %135 {offsets = [0, 0], sizes = [2, 32], strides = [1, 1]} : vector<2x128xf32> to vector<2x32xf32>
    %cst_50 = arith.constant 0.000000e+00 : f32
    %137 = vector.broadcast %cst_50 : f32 to vector<2x32xf32>
    %138 = arith.subf %137, %136 : vector<2x32xf32>
    %139 = math.exp %138 : vector<2x32xf32>
    %cst_51 = arith.constant 1.000000e+00 : f32
    %140 = vector.broadcast %cst_51 : f32 to vector<2x32xf32>
    %141 = arith.addf %140, %139 : vector<2x32xf32>
    %cst_52 = arith.constant 1.000000e+00 : f32
    %142 = vector.broadcast %cst_52 : f32 to vector<2x32xf32>
    %143 = arith.divf %142, %141 : vector<2x32xf32>
    %144 = vector.extract_strided_slice %135 {offsets = [0, 32], sizes = [2, 32], strides = [1, 1]} : vector<2x128xf32> to vector<2x32xf32>
    %cst_53 = arith.constant 0.000000e+00 : f32
    %145 = vector.broadcast %cst_53 : f32 to vector<2x32xf32>
    %146 = arith.subf %145, %144 : vector<2x32xf32>
    %147 = math.exp %146 : vector<2x32xf32>
    %cst_54 = arith.constant 1.000000e+00 : f32
    %148 = vector.broadcast %cst_54 : f32 to vector<2x32xf32>
    %149 = arith.addf %148, %147 : vector<2x32xf32>
    %cst_55 = arith.constant 1.000000e+00 : f32
    %150 = vector.broadcast %cst_55 : f32 to vector<2x32xf32>
    %151 = arith.divf %150, %149 : vector<2x32xf32>
    %152 = vector.extract_strided_slice %135 {offsets = [0, 64], sizes = [2, 32], strides = [1, 1]} : vector<2x128xf32> to vector<2x32xf32>
    %153 = math.tanh %152 : vector<2x32xf32>
    %154 = vector.extract_strided_slice %135 {offsets = [0, 96], sizes = [2, 32], strides = [1, 1]} : vector<2x128xf32> to vector<2x32xf32>
    %cst_56 = arith.constant 0.000000e+00 : f32
    %155 = vector.broadcast %cst_56 : f32 to vector<2x32xf32>
    %156 = arith.subf %155, %154 : vector<2x32xf32>
    %157 = math.exp %156 : vector<2x32xf32>
    %cst_57 = arith.constant 1.000000e+00 : f32
    %158 = vector.broadcast %cst_57 : f32 to vector<2x32xf32>
    %159 = arith.addf %158, %157 : vector<2x32xf32>
    %cst_58 = arith.constant 1.000000e+00 : f32
    %160 = vector.broadcast %cst_58 : f32 to vector<2x32xf32>
    %161 = arith.divf %160, %159 : vector<2x32xf32>
    %162 = arith.mulf %151, %94 : vector<2x32xf32>
    %163 = arith.mulf %143, %153 : vector<2x32xf32>
    %164 = arith.addf %162, %163 : vector<2x32xf32>
    %165 = math.tanh %164 : vector<2x32xf32>
    %166 = arith.mulf %161, %165 : vector<2x32xf32>
    %c2 = arith.constant 2 : index
    %c0_59 = arith.constant 0 : index
    %167 = vector.load %arg11[%c2, %c0_59] : memref<16x32xf32, #tpu.memory_space<vmem>>, vector<2x32xf32>
    tpu.vector_store %arg11[%c2, %c0_59], %166 {strides = array<i32>} : memref<16x32xf32, #tpu.memory_space<vmem>>, vector<2x32xf32>,
    %168 = vector.extract_strided_slice %132 {offsets = [0, 0], sizes = [2, 128], strides = [1, 1]} : vector<2x256xf32> to vector<2x128xf32>
    %169 = arith.addf %168, %10 : vector<2x128xf32>
    %170 = vector.extract_strided_slice %169 {offsets = [0, 0], sizes = [2, 32], strides = [1, 1]} : vector<2x128xf32> to vector<2x32xf32>
    %cst_60 = arith.constant 0.000000e+00 : f32
    %171 = vector.broadcast %cst_60 : f32 to vector<2x32xf32>
    %172 = arith.subf %171, %170 : vector<2x32xf32>
    %173 = math.exp %172 : vector<2x32xf32>
    %cst_61 = arith.constant 1.000000e+00 : f32
    %174 = vector.broadcast %cst_61 : f32 to vector<2x32xf32>
    %175 = arith.addf %174, %173 : vector<2x32xf32>
    %cst_62 = arith.constant 1.000000e+00 : f32
    %176 = vector.broadcast %cst_62 : f32 to vector<2x32xf32>
    %177 = arith.divf %176, %175 : vector<2x32xf32>
    %178 = vector.extract_strided_slice %169 {offsets = [0, 32], sizes = [2, 32], strides = [1, 1]} : vector<2x128xf32> to vector<2x32xf32>
    %cst_63 = arith.constant 0.000000e+00 : f32
    %179 = vector.broadcast %cst_63 : f32 to vector<2x32xf32>
    %180 = arith.subf %179, %178 : vector<2x32xf32>
    %181 = math.exp %180 : vector<2x32xf32>
    %cst_64 = arith.constant 1.000000e+00 : f32
    %182 = vector.broadcast %cst_64 : f32 to vector<2x32xf32>
    %183 = arith.addf %182, %181 : vector<2x32xf32>
    %cst_65 = arith.constant 1.000000e+00 : f32
    %184 = vector.broadcast %cst_65 : f32 to vector<2x32xf32>
    %185 = arith.divf %184, %183 : vector<2x32xf32>
    %186 = vector.extract_strided_slice %169 {offsets = [0, 64], sizes = [2, 32], strides = [1, 1]} : vector<2x128xf32> to vector<2x32xf32>
    %187 = math.tanh %186 : vector<2x32xf32>
    %188 = vector.extract_strided_slice %169 {offsets = [0, 96], sizes = [2, 32], strides = [1, 1]} : vector<2x128xf32> to vector<2x32xf32>
    %cst_66 = arith.constant 0.000000e+00 : f32
    %189 = vector.broadcast %cst_66 : f32 to vector<2x32xf32>
    %190 = arith.subf %189, %188 : vector<2x32xf32>
    %191 = math.exp %190 : vector<2x32xf32>
    %cst_67 = arith.constant 1.000000e+00 : f32
    %192 = vector.broadcast %cst_67 : f32 to vector<2x32xf32>
    %193 = arith.addf %192, %191 : vector<2x32xf32>
    %cst_68 = arith.constant 1.000000e+00 : f32
    %194 = vector.broadcast %cst_68 : f32 to vector<2x32xf32>
    %195 = arith.divf %194, %193 : vector<2x32xf32>
    %196 = arith.mulf %185, %128 : vector<2x32xf32>
    %197 = arith.mulf %177, %187 : vector<2x32xf32>
    %198 = arith.addf %196, %197 : vector<2x32xf32>
    %199 = math.tanh %198 : vector<2x32xf32>
    %200 = arith.mulf %195, %199 : vector<2x32xf32>
    %201 = tpu.concatenate %200, %166 in 1 : vector<2x32xf32>, vector<2x32xf32> -> vector<2x64xf32>
    %cst_69 = arith.constant dense<0.000000e+00> : vector<2x256xf32>
    %202 = tpu.matmul %201, %16, %cst_69 {dimension_numbers = #tpu.dot_dimension_numbers<[1], [0], [0], [1], [0, 0, 1, 1], [], []>} : vector<2x64xf32>, vector<64x256xf32>, vector<2x256xf32> -> vector<2x256xf32>
    %203 = vector.extract_strided_slice %202 {offsets = [0, 128], sizes = [2, 128], strides = [1, 1]} : vector<2x256xf32> to vector<2x128xf32>
    %204 = vector.broadcast %17 : vector<1x128xf32> to vector<2x128xf32>
    %205 = arith.addf %203, %204 : vector<2x128xf32>
    %206 = vector.extract_strided_slice %205 {offsets = [0, 0], sizes = [2, 32], strides = [1, 1]} : vector<2x128xf32> to vector<2x32xf32>
    %cst_70 = arith.constant 0.000000e+00 : f32
    %207 = vector.broadcast %cst_70 : f32 to vector<2x32xf32>
    %208 = arith.subf %207, %206 : vector<2x32xf32>
    %209 = math.exp %208 : vector<2x32xf32>
    %cst_71 = arith.constant 1.000000e+00 : f32
    %210 = vector.broadcast %cst_71 : f32 to vector<2x32xf32>
    %211 = arith.addf %210, %209 : vector<2x32xf32>
    %cst_72 = arith.constant 1.000000e+00 : f32
    %212 = vector.broadcast %cst_72 : f32 to vector<2x32xf32>
    %213 = arith.divf %212, %211 : vector<2x32xf32>
    %214 = vector.extract_strided_slice %205 {offsets = [0, 32], sizes = [2, 32], strides = [1, 1]} : vector<2x128xf32> to vector<2x32xf32>
    %cst_73 = arith.constant 0.000000e+00 : f32
    %215 = vector.broadcast %cst_73 : f32 to vector<2x32xf32>
    %216 = arith.subf %215, %214 : vector<2x32xf32>
    %217 = math.exp %216 : vector<2x32xf32>
    %cst_74 = arith.constant 1.000000e+00 : f32
    %218 = vector.broadcast %cst_74 : f32 to vector<2x32xf32>
    %219 = arith.addf %218, %217 : vector<2x32xf32>
    %cst_75 = arith.constant 1.000000e+00 : f32
    %220 = vector.broadcast %cst_75 : f32 to vector<2x32xf32>
    %221 = arith.divf %220, %219 : vector<2x32xf32>
    %222 = vector.extract_strided_slice %205 {offsets = [0, 64], sizes = [2, 32], strides = [1, 1]} : vector<2x128xf32> to vector<2x32xf32>
    %223 = math.tanh %222 : vector<2x32xf32>
    %224 = vector.extract_strided_slice %205 {offsets = [0, 96], sizes = [2, 32], strides = [1, 1]} : vector<2x128xf32> to vector<2x32xf32>
    %cst_76 = arith.constant 0.000000e+00 : f32
    %225 = vector.broadcast %cst_76 : f32 to vector<2x32xf32>
    %226 = arith.subf %225, %224 : vector<2x32xf32>
    %227 = math.exp %226 : vector<2x32xf32>
    %cst_77 = arith.constant 1.000000e+00 : f32
    %228 = vector.broadcast %cst_77 : f32 to vector<2x32xf32>
    %229 = arith.addf %228, %227 : vector<2x32xf32>
    %cst_78 = arith.constant 1.000000e+00 : f32
    %230 = vector.broadcast %cst_78 : f32 to vector<2x32xf32>
    %231 = arith.divf %230, %229 : vector<2x32xf32>
    %232 = arith.mulf %221, %164 : vector<2x32xf32>
    %233 = arith.mulf %213, %223 : vector<2x32xf32>
    %234 = arith.addf %232, %233 : vector<2x32xf32>
    %235 = math.tanh %234 : vector<2x32xf32>
    %236 = arith.mulf %231, %235 : vector<2x32xf32>
    %c4 = arith.constant 4 : index
    %c0_79 = arith.constant 0 : index
    %237 = vector.load %arg11[%c4, %c0_79] : memref<16x32xf32, #tpu.memory_space<vmem>>, vector<2x32xf32>
    tpu.vector_store %arg11[%c4, %c0_79], %236 {strides = array<i32>} : memref<16x32xf32, #tpu.memory_space<vmem>>, vector<2x32xf32>,
    %238 = vector.extract_strided_slice %202 {offsets = [0, 0], sizes = [2, 128], strides = [1, 1]} : vector<2x256xf32> to vector<2x128xf32>
    %239 = arith.addf %238, %11 : vector<2x128xf32>
    %240 = vector.extract_strided_slice %239 {offsets = [0, 0], sizes = [2, 32], strides = [1, 1]} : vector<2x128xf32> to vector<2x32xf32>
    %cst_80 = arith.constant 0.000000e+00 : f32
    %241 = vector.broadcast %cst_80 : f32 to vector<2x32xf32>
    %242 = arith.subf %241, %240 : vector<2x32xf32>
    %243 = math.exp %242 : vector<2x32xf32>
    %cst_81 = arith.constant 1.000000e+00 : f32
    %244 = vector.broadcast %cst_81 : f32 to vector<2x32xf32>
    %245 = arith.addf %244, %243 : vector<2x32xf32>
    %cst_82 = arith.constant 1.000000e+00 : f32
    %246 = vector.broadcast %cst_82 : f32 to vector<2x32xf32>
    %247 = arith.divf %246, %245 : vector<2x32xf32>
    %248 = vector.extract_strided_slice %239 {offsets = [0, 32], sizes = [2, 32], strides = [1, 1]} : vector<2x128xf32> to vector<2x32xf32>
    %cst_83 = arith.constant 0.000000e+00 : f32
    %249 = vector.broadcast %cst_83 : f32 to vector<2x32xf32>
    %250 = arith.subf %249, %248 : vector<2x32xf32>
    %251 = math.exp %250 : vector<2x32xf32>
    %cst_84 = arith.constant 1.000000e+00 : f32
    %252 = vector.broadcast %cst_84 : f32 to vector<2x32xf32>
    %253 = arith.addf %252, %251 : vector<2x32xf32>
    %cst_85 = arith.constant 1.000000e+00 : f32
    %254 = vector.broadcast %cst_85 : f32 to vector<2x32xf32>
    %255 = arith.divf %254, %253 : vector<2x32xf32>
    %256 = vector.extract_strided_slice %239 {offsets = [0, 64], sizes = [2, 32], strides = [1, 1]} : vector<2x128xf32> to vector<2x32xf32>
    %257 = math.tanh %256 : vector<2x32xf32>
    %258 = vector.extract_strided_slice %239 {offsets = [0, 96], sizes = [2, 32], strides = [1, 1]} : vector<2x128xf32> to vector<2x32xf32>
    %cst_86 = arith.constant 0.000000e+00 : f32
    %259 = vector.broadcast %cst_86 : f32 to vector<2x32xf32>
    %260 = arith.subf %259, %258 : vector<2x32xf32>
    %261 = math.exp %260 : vector<2x32xf32>
    %cst_87 = arith.constant 1.000000e+00 : f32
    %262 = vector.broadcast %cst_87 : f32 to vector<2x32xf32>
    %263 = arith.addf %262, %261 : vector<2x32xf32>
    %cst_88 = arith.constant 1.000000e+00 : f32
    %264 = vector.broadcast %cst_88 : f32 to vector<2x32xf32>
    %265 = arith.divf %264, %263 : vector<2x32xf32>
    %266 = arith.mulf %255, %198 : vector<2x32xf32>
    %267 = arith.mulf %247, %257 : vector<2x32xf32>
    %268 = arith.addf %266, %267 : vector<2x32xf32>
    %269 = math.tanh %268 : vector<2x32xf32>
    %270 = arith.mulf %265, %269 : vector<2x32xf32>
    %271 = tpu.concatenate %270, %236 in 1 : vector<2x32xf32>, vector<2x32xf32> -> vector<2x64xf32>
    %cst_89 = arith.constant dense<0.000000e+00> : vector<2x256xf32>
    %272 = tpu.matmul %271, %16, %cst_89 {dimension_numbers = #tpu.dot_dimension_numbers<[1], [0], [0], [1], [0, 0, 1, 1], [], []>} : vector<2x64xf32>, vector<64x256xf32>, vector<2x256xf32> -> vector<2x256xf32>
    %273 = vector.extract_strided_slice %272 {offsets = [0, 128], sizes = [2, 128], strides = [1, 1]} : vector<2x256xf32> to vector<2x128xf32>
    %274 = vector.broadcast %17 : vector<1x128xf32> to vector<2x128xf32>
    %275 = arith.addf %273, %274 : vector<2x128xf32>
    %276 = vector.extract_strided_slice %275 {offsets = [0, 0], sizes = [2, 32], strides = [1, 1]} : vector<2x128xf32> to vector<2x32xf32>
    %cst_90 = arith.constant 0.000000e+00 : f32
    %277 = vector.broadcast %cst_90 : f32 to vector<2x32xf32>
    %278 = arith.subf %277, %276 : vector<2x32xf32>
    %279 = math.exp %278 : vector<2x32xf32>
    %cst_91 = arith.constant 1.000000e+00 : f32
    %280 = vector.broadcast %cst_91 : f32 to vector<2x32xf32>
    %281 = arith.addf %280, %279 : vector<2x32xf32>
    %cst_92 = arith.constant 1.000000e+00 : f32
    %282 = vector.broadcast %cst_92 : f32 to vector<2x32xf32>
    %283 = arith.divf %282, %281 : vector<2x32xf32>
    %284 = vector.extract_strided_slice %275 {offsets = [0, 32], sizes = [2, 32], strides = [1, 1]} : vector<2x128xf32> to vector<2x32xf32>
    %cst_93 = arith.constant 0.000000e+00 : f32
    %285 = vector.broadcast %cst_93 : f32 to vector<2x32xf32>
    %286 = arith.subf %285, %284 : vector<2x32xf32>
    %287 = math.exp %286 : vector<2x32xf32>
    %cst_94 = arith.constant 1.000000e+00 : f32
    %288 = vector.broadcast %cst_94 : f32 to vector<2x32xf32>
    %289 = arith.addf %288, %287 : vector<2x32xf32>
    %cst_95 = arith.constant 1.000000e+00 : f32
    %290 = vector.broadcast %cst_95 : f32 to vector<2x32xf32>
    %291 = arith.divf %290, %289 : vector<2x32xf32>
    %292 = vector.extract_strided_slice %275 {offsets = [0, 64], sizes = [2, 32], strides = [1, 1]} : vector<2x128xf32> to vector<2x32xf32>
    %293 = math.tanh %292 : vector<2x32xf32>
    %294 = vector.extract_strided_slice %275 {offsets = [0, 96], sizes = [2, 32], strides = [1, 1]} : vector<2x128xf32> to vector<2x32xf32>
    %cst_96 = arith.constant 0.000000e+00 : f32
    %295 = vector.broadcast %cst_96 : f32 to vector<2x32xf32>
    %296 = arith.subf %295, %294 : vector<2x32xf32>
    %297 = math.exp %296 : vector<2x32xf32>
    %cst_97 = arith.constant 1.000000e+00 : f32
    %298 = vector.broadcast %cst_97 : f32 to vector<2x32xf32>
    %299 = arith.addf %298, %297 : vector<2x32xf32>
    %cst_98 = arith.constant 1.000000e+00 : f32
    %300 = vector.broadcast %cst_98 : f32 to vector<2x32xf32>
    %301 = arith.divf %300, %299 : vector<2x32xf32>
    %302 = arith.mulf %291, %234 : vector<2x32xf32>
    %303 = arith.mulf %283, %293 : vector<2x32xf32>
    %304 = arith.addf %302, %303 : vector<2x32xf32>
    %305 = math.tanh %304 : vector<2x32xf32>
    %306 = arith.mulf %301, %305 : vector<2x32xf32>
    %c6 = arith.constant 6 : index
    %c0_99 = arith.constant 0 : index
    %307 = vector.load %arg11[%c6, %c0_99] : memref<16x32xf32, #tpu.memory_space<vmem>>, vector<2x32xf32>
    tpu.vector_store %arg11[%c6, %c0_99], %306 {strides = array<i32>} : memref<16x32xf32, #tpu.memory_space<vmem>>, vector<2x32xf32>,
    %308 = vector.extract_strided_slice %272 {offsets = [0, 0], sizes = [2, 128], strides = [1, 1]} : vector<2x256xf32> to vector<2x128xf32>
    %309 = arith.addf %308, %12 : vector<2x128xf32>
    %310 = vector.extract_strided_slice %309 {offsets = [0, 0], sizes = [2, 32], strides = [1, 1]} : vector<2x128xf32> to vector<2x32xf32>
    %cst_100 = arith.constant 0.000000e+00 : f32
    %311 = vector.broadcast %cst_100 : f32 to vector<2x32xf32>
    %312 = arith.subf %311, %310 : vector<2x32xf32>
    %313 = math.exp %312 : vector<2x32xf32>
    %cst_101 = arith.constant 1.000000e+00 : f32
    %314 = vector.broadcast %cst_101 : f32 to vector<2x32xf32>
    %315 = arith.addf %314, %313 : vector<2x32xf32>
    %cst_102 = arith.constant 1.000000e+00 : f32
    %316 = vector.broadcast %cst_102 : f32 to vector<2x32xf32>
    %317 = arith.divf %316, %315 : vector<2x32xf32>
    %318 = vector.extract_strided_slice %309 {offsets = [0, 32], sizes = [2, 32], strides = [1, 1]} : vector<2x128xf32> to vector<2x32xf32>
    %cst_103 = arith.constant 0.000000e+00 : f32
    %319 = vector.broadcast %cst_103 : f32 to vector<2x32xf32>
    %320 = arith.subf %319, %318 : vector<2x32xf32>
    %321 = math.exp %320 : vector<2x32xf32>
    %cst_104 = arith.constant 1.000000e+00 : f32
    %322 = vector.broadcast %cst_104 : f32 to vector<2x32xf32>
    %323 = arith.addf %322, %321 : vector<2x32xf32>
    %cst_105 = arith.constant 1.000000e+00 : f32
    %324 = vector.broadcast %cst_105 : f32 to vector<2x32xf32>
    %325 = arith.divf %324, %323 : vector<2x32xf32>
    %326 = vector.extract_strided_slice %309 {offsets = [0, 64], sizes = [2, 32], strides = [1, 1]} : vector<2x128xf32> to vector<2x32xf32>
    %327 = math.tanh %326 : vector<2x32xf32>
    %328 = vector.extract_strided_slice %309 {offsets = [0, 96], sizes = [2, 32], strides = [1, 1]} : vector<2x128xf32> to vector<2x32xf32>
    %cst_106 = arith.constant 0.000000e+00 : f32
    %329 = vector.broadcast %cst_106 : f32 to vector<2x32xf32>
    %330 = arith.subf %329, %328 : vector<2x32xf32>
    %331 = math.exp %330 : vector<2x32xf32>
    %cst_107 = arith.constant 1.000000e+00 : f32
    %332 = vector.broadcast %cst_107 : f32 to vector<2x32xf32>
    %333 = arith.addf %332, %331 : vector<2x32xf32>
    %cst_108 = arith.constant 1.000000e+00 : f32
    %334 = vector.broadcast %cst_108 : f32 to vector<2x32xf32>
    %335 = arith.divf %334, %333 : vector<2x32xf32>
    %336 = arith.mulf %325, %268 : vector<2x32xf32>
    %337 = arith.mulf %317, %327 : vector<2x32xf32>
    %338 = arith.addf %336, %337 : vector<2x32xf32>
    %339 = math.tanh %338 : vector<2x32xf32>
    %340 = arith.mulf %335, %339 : vector<2x32xf32>
    %341 = tpu.concatenate %340, %306 in 1 : vector<2x32xf32>, vector<2x32xf32> -> vector<2x64xf32>
    %cst_109 = arith.constant dense<0.000000e+00> : vector<2x256xf32>
    %342 = tpu.matmul %341, %16, %cst_109 {dimension_numbers = #tpu.dot_dimension_numbers<[1], [0], [0], [1], [0, 0, 1, 1], [], []>} : vector<2x64xf32>, vector<64x256xf32>, vector<2x256xf32> -> vector<2x256xf32>
    %343 = vector.extract_strided_slice %342 {offsets = [0, 128], sizes = [2, 128], strides = [1, 1]} : vector<2x256xf32> to vector<2x128xf32>
    %344 = vector.broadcast %17 : vector<1x128xf32> to vector<2x128xf32>
    %345 = arith.addf %343, %344 : vector<2x128xf32>
    %346 = vector.extract_strided_slice %345 {offsets = [0, 0], sizes = [2, 32], strides = [1, 1]} : vector<2x128xf32> to vector<2x32xf32>
    %cst_110 = arith.constant 0.000000e+00 : f32
    %347 = vector.broadcast %cst_110 : f32 to vector<2x32xf32>
    %348 = arith.subf %347, %346 : vector<2x32xf32>
    %349 = math.exp %348 : vector<2x32xf32>
    %cst_111 = arith.constant 1.000000e+00 : f32
    %350 = vector.broadcast %cst_111 : f32 to vector<2x32xf32>
    %351 = arith.addf %350, %349 : vector<2x32xf32>
    %cst_112 = arith.constant 1.000000e+00 : f32
    %352 = vector.broadcast %cst_112 : f32 to vector<2x32xf32>
    %353 = arith.divf %352, %351 : vector<2x32xf32>
    %354 = vector.extract_strided_slice %345 {offsets = [0, 32], sizes = [2, 32], strides = [1, 1]} : vector<2x128xf32> to vector<2x32xf32>
    %cst_113 = arith.constant 0.000000e+00 : f32
    %355 = vector.broadcast %cst_113 : f32 to vector<2x32xf32>
    %356 = arith.subf %355, %354 : vector<2x32xf32>
    %357 = math.exp %356 : vector<2x32xf32>
    %cst_114 = arith.constant 1.000000e+00 : f32
    %358 = vector.broadcast %cst_114 : f32 to vector<2x32xf32>
    %359 = arith.addf %358, %357 : vector<2x32xf32>
    %cst_115 = arith.constant 1.000000e+00 : f32
    %360 = vector.broadcast %cst_115 : f32 to vector<2x32xf32>
    %361 = arith.divf %360, %359 : vector<2x32xf32>
    %362 = vector.extract_strided_slice %345 {offsets = [0, 64], sizes = [2, 32], strides = [1, 1]} : vector<2x128xf32> to vector<2x32xf32>
    %363 = math.tanh %362 : vector<2x32xf32>
    %364 = vector.extract_strided_slice %345 {offsets = [0, 96], sizes = [2, 32], strides = [1, 1]} : vector<2x128xf32> to vector<2x32xf32>
    %cst_116 = arith.constant 0.000000e+00 : f32
    %365 = vector.broadcast %cst_116 : f32 to vector<2x32xf32>
    %366 = arith.subf %365, %364 : vector<2x32xf32>
    %367 = math.exp %366 : vector<2x32xf32>
    %cst_117 = arith.constant 1.000000e+00 : f32
    %368 = vector.broadcast %cst_117 : f32 to vector<2x32xf32>
    %369 = arith.addf %368, %367 : vector<2x32xf32>
    %cst_118 = arith.constant 1.000000e+00 : f32
    %370 = vector.broadcast %cst_118 : f32 to vector<2x32xf32>
    %371 = arith.divf %370, %369 : vector<2x32xf32>
    %372 = arith.mulf %361, %304 : vector<2x32xf32>
    %373 = arith.mulf %353, %363 : vector<2x32xf32>
    %374 = arith.addf %372, %373 : vector<2x32xf32>
    %375 = math.tanh %374 : vector<2x32xf32>
    %376 = arith.mulf %371, %375 : vector<2x32xf32>
    %c8 = arith.constant 8 : index
    %c0_119 = arith.constant 0 : index
    %377 = vector.load %arg11[%c8, %c0_119] : memref<16x32xf32, #tpu.memory_space<vmem>>, vector<2x32xf32>
    tpu.vector_store %arg11[%c8, %c0_119], %376 {strides = array<i32>} : memref<16x32xf32, #tpu.memory_space<vmem>>, vector<2x32xf32>,
    %378 = vector.extract_strided_slice %342 {offsets = [0, 0], sizes = [2, 128], strides = [1, 1]} : vector<2x256xf32> to vector<2x128xf32>
    %379 = arith.addf %378, %13 : vector<2x128xf32>
    %380 = vector.extract_strided_slice %379 {offsets = [0, 0], sizes = [2, 32], strides = [1, 1]} : vector<2x128xf32> to vector<2x32xf32>
    %cst_120 = arith.constant 0.000000e+00 : f32
    %381 = vector.broadcast %cst_120 : f32 to vector<2x32xf32>
    %382 = arith.subf %381, %380 : vector<2x32xf32>
    %383 = math.exp %382 : vector<2x32xf32>
    %cst_121 = arith.constant 1.000000e+00 : f32
    %384 = vector.broadcast %cst_121 : f32 to vector<2x32xf32>
    %385 = arith.addf %384, %383 : vector<2x32xf32>
    %cst_122 = arith.constant 1.000000e+00 : f32
    %386 = vector.broadcast %cst_122 : f32 to vector<2x32xf32>
    %387 = arith.divf %386, %385 : vector<2x32xf32>
    %388 = vector.extract_strided_slice %379 {offsets = [0, 32], sizes = [2, 32], strides = [1, 1]} : vector<2x128xf32> to vector<2x32xf32>
    %cst_123 = arith.constant 0.000000e+00 : f32
    %389 = vector.broadcast %cst_123 : f32 to vector<2x32xf32>
    %390 = arith.subf %389, %388 : vector<2x32xf32>
    %391 = math.exp %390 : vector<2x32xf32>
    %cst_124 = arith.constant 1.000000e+00 : f32
    %392 = vector.broadcast %cst_124 : f32 to vector<2x32xf32>
    %393 = arith.addf %392, %391 : vector<2x32xf32>
    %cst_125 = arith.constant 1.000000e+00 : f32
    %394 = vector.broadcast %cst_125 : f32 to vector<2x32xf32>
    %395 = arith.divf %394, %393 : vector<2x32xf32>
    %396 = vector.extract_strided_slice %379 {offsets = [0, 64], sizes = [2, 32], strides = [1, 1]} : vector<2x128xf32> to vector<2x32xf32>
    %397 = math.tanh %396 : vector<2x32xf32>
    %398 = vector.extract_strided_slice %379 {offsets = [0, 96], sizes = [2, 32], strides = [1, 1]} : vector<2x128xf32> to vector<2x32xf32>
    %cst_126 = arith.constant 0.000000e+00 : f32
    %399 = vector.broadcast %cst_126 : f32 to vector<2x32xf32>
    %400 = arith.subf %399, %398 : vector<2x32xf32>
    %401 = math.exp %400 : vector<2x32xf32>
    %cst_127 = arith.constant 1.000000e+00 : f32
    %402 = vector.broadcast %cst_127 : f32 to vector<2x32xf32>
    %403 = arith.addf %402, %401 : vector<2x32xf32>
    %cst_128 = arith.constant 1.000000e+00 : f32
    %404 = vector.broadcast %cst_128 : f32 to vector<2x32xf32>
    %405 = arith.divf %404, %403 : vector<2x32xf32>
    %406 = arith.mulf %395, %338 : vector<2x32xf32>
    %407 = arith.mulf %387, %397 : vector<2x32xf32>
    %408 = arith.addf %406, %407 : vector<2x32xf32>
    %409 = math.tanh %408 : vector<2x32xf32>
    %410 = arith.mulf %405, %409 : vector<2x32xf32>
    %411 = tpu.concatenate %410, %376 in 1 : vector<2x32xf32>, vector<2x32xf32> -> vector<2x64xf32>
    %cst_129 = arith.constant dense<0.000000e+00> : vector<2x256xf32>
    %412 = tpu.matmul %411, %16, %cst_129 {dimension_numbers = #tpu.dot_dimension_numbers<[1], [0], [0], [1], [0, 0, 1, 1], [], []>} : vector<2x64xf32>, vector<64x256xf32>, vector<2x256xf32> -> vector<2x256xf32>
    %413 = vector.extract_strided_slice %412 {offsets = [0, 128], sizes = [2, 128], strides = [1, 1]} : vector<2x256xf32> to vector<2x128xf32>
    %414 = vector.broadcast %17 : vector<1x128xf32> to vector<2x128xf32>
    %415 = arith.addf %413, %414 : vector<2x128xf32>
    %416 = vector.extract_strided_slice %415 {offsets = [0, 0], sizes = [2, 32], strides = [1, 1]} : vector<2x128xf32> to vector<2x32xf32>
    %cst_130 = arith.constant 0.000000e+00 : f32
    %417 = vector.broadcast %cst_130 : f32 to vector<2x32xf32>
    %418 = arith.subf %417, %416 : vector<2x32xf32>
    %419 = math.exp %418 : vector<2x32xf32>
    %cst_131 = arith.constant 1.000000e+00 : f32
    %420 = vector.broadcast %cst_131 : f32 to vector<2x32xf32>
    %421 = arith.addf %420, %419 : vector<2x32xf32>
    %cst_132 = arith.constant 1.000000e+00 : f32
    %422 = vector.broadcast %cst_132 : f32 to vector<2x32xf32>
    %423 = arith.divf %422, %421 : vector<2x32xf32>
    %424 = vector.extract_strided_slice %415 {offsets = [0, 32], sizes = [2, 32], strides = [1, 1]} : vector<2x128xf32> to vector<2x32xf32>
    %cst_133 = arith.constant 0.000000e+00 : f32
    %425 = vector.broadcast %cst_133 : f32 to vector<2x32xf32>
    %426 = arith.subf %425, %424 : vector<2x32xf32>
    %427 = math.exp %426 : vector<2x32xf32>
    %cst_134 = arith.constant 1.000000e+00 : f32
    %428 = vector.broadcast %cst_134 : f32 to vector<2x32xf32>
    %429 = arith.addf %428, %427 : vector<2x32xf32>
    %cst_135 = arith.constant 1.000000e+00 : f32
    %430 = vector.broadcast %cst_135 : f32 to vector<2x32xf32>
    %431 = arith.divf %430, %429 : vector<2x32xf32>
    %432 = vector.extract_strided_slice %415 {offsets = [0, 64], sizes = [2, 32], strides = [1, 1]} : vector<2x128xf32> to vector<2x32xf32>
    %433 = math.tanh %432 : vector<2x32xf32>
    %434 = vector.extract_strided_slice %415 {offsets = [0, 96], sizes = [2, 32], strides = [1, 1]} : vector<2x128xf32> to vector<2x32xf32>
    %cst_136 = arith.constant 0.000000e+00 : f32
    %435 = vector.broadcast %cst_136 : f32 to vector<2x32xf32>
    %436 = arith.subf %435, %434 : vector<2x32xf32>
    %437 = math.exp %436 : vector<2x32xf32>
    %cst_137 = arith.constant 1.000000e+00 : f32
    %438 = vector.broadcast %cst_137 : f32 to vector<2x32xf32>
    %439 = arith.addf %438, %437 : vector<2x32xf32>
    %cst_138 = arith.constant 1.000000e+00 : f32
    %440 = vector.broadcast %cst_138 : f32 to vector<2x32xf32>
    %441 = arith.divf %440, %439 : vector<2x32xf32>
    %442 = arith.mulf %431, %374 : vector<2x32xf32>
    %443 = arith.mulf %423, %433 : vector<2x32xf32>
    %444 = arith.addf %442, %443 : vector<2x32xf32>
    %445 = math.tanh %444 : vector<2x32xf32>
    %446 = arith.mulf %441, %445 : vector<2x32xf32>
    %c10 = arith.constant 10 : index
    %c0_139 = arith.constant 0 : index
    %447 = vector.load %arg11[%c10, %c0_139] : memref<16x32xf32, #tpu.memory_space<vmem>>, vector<2x32xf32>
    tpu.vector_store %arg11[%c10, %c0_139], %446 {strides = array<i32>} : memref<16x32xf32, #tpu.memory_space<vmem>>, vector<2x32xf32>,
    %448 = vector.extract_strided_slice %412 {offsets = [0, 0], sizes = [2, 128], strides = [1, 1]} : vector<2x256xf32> to vector<2x128xf32>
    %449 = arith.addf %448, %14 : vector<2x128xf32>
    %450 = vector.extract_strided_slice %449 {offsets = [0, 0], sizes = [2, 32], strides = [1, 1]} : vector<2x128xf32> to vector<2x32xf32>
    %cst_140 = arith.constant 0.000000e+00 : f32
    %451 = vector.broadcast %cst_140 : f32 to vector<2x32xf32>
    %452 = arith.subf %451, %450 : vector<2x32xf32>
    %453 = math.exp %452 : vector<2x32xf32>
    %cst_141 = arith.constant 1.000000e+00 : f32
    %454 = vector.broadcast %cst_141 : f32 to vector<2x32xf32>
    %455 = arith.addf %454, %453 : vector<2x32xf32>
    %cst_142 = arith.constant 1.000000e+00 : f32
    %456 = vector.broadcast %cst_142 : f32 to vector<2x32xf32>
    %457 = arith.divf %456, %455 : vector<2x32xf32>
    %458 = vector.extract_strided_slice %449 {offsets = [0, 32], sizes = [2, 32], strides = [1, 1]} : vector<2x128xf32> to vector<2x32xf32>
    %cst_143 = arith.constant 0.000000e+00 : f32
    %459 = vector.broadcast %cst_143 : f32 to vector<2x32xf32>
    %460 = arith.subf %459, %458 : vector<2x32xf32>
    %461 = math.exp %460 : vector<2x32xf32>
    %cst_144 = arith.constant 1.000000e+00 : f32
    %462 = vector.broadcast %cst_144 : f32 to vector<2x32xf32>
    %463 = arith.addf %462, %461 : vector<2x32xf32>
    %cst_145 = arith.constant 1.000000e+00 : f32
    %464 = vector.broadcast %cst_145 : f32 to vector<2x32xf32>
    %465 = arith.divf %464, %463 : vector<2x32xf32>
    %466 = vector.extract_strided_slice %449 {offsets = [0, 64], sizes = [2, 32], strides = [1, 1]} : vector<2x128xf32> to vector<2x32xf32>
    %467 = math.tanh %466 : vector<2x32xf32>
    %468 = vector.extract_strided_slice %449 {offsets = [0, 96], sizes = [2, 32], strides = [1, 1]} : vector<2x128xf32> to vector<2x32xf32>
    %cst_146 = arith.constant 0.000000e+00 : f32
    %469 = vector.broadcast %cst_146 : f32 to vector<2x32xf32>
    %470 = arith.subf %469, %468 : vector<2x32xf32>
    %471 = math.exp %470 : vector<2x32xf32>
    %cst_147 = arith.constant 1.000000e+00 : f32
    %472 = vector.broadcast %cst_147 : f32 to vector<2x32xf32>
    %473 = arith.addf %472, %471 : vector<2x32xf32>
    %cst_148 = arith.constant 1.000000e+00 : f32
    %474 = vector.broadcast %cst_148 : f32 to vector<2x32xf32>
    %475 = arith.divf %474, %473 : vector<2x32xf32>
    %476 = arith.mulf %465, %408 : vector<2x32xf32>
    %477 = arith.mulf %457, %467 : vector<2x32xf32>
    %478 = arith.addf %476, %477 : vector<2x32xf32>
    %479 = math.tanh %478 : vector<2x32xf32>
    %480 = arith.mulf %475, %479 : vector<2x32xf32>
    %481 = tpu.concatenate %480, %446 in 1 : vector<2x32xf32>, vector<2x32xf32> -> vector<2x64xf32>
    %cst_149 = arith.constant dense<0.000000e+00> : vector<2x256xf32>
    %482 = tpu.matmul %481, %16, %cst_149 {dimension_numbers = #tpu.dot_dimension_numbers<[1], [0], [0], [1], [0, 0, 1, 1], [], []>} : vector<2x64xf32>, vector<64x256xf32>, vector<2x256xf32> -> vector<2x256xf32>
    %483 = vector.extract_strided_slice %482 {offsets = [0, 128], sizes = [2, 128], strides = [1, 1]} : vector<2x256xf32> to vector<2x128xf32>
    %484 = vector.broadcast %17 : vector<1x128xf32> to vector<2x128xf32>
    %485 = arith.addf %483, %484 : vector<2x128xf32>
    %486 = vector.extract_strided_slice %485 {offsets = [0, 0], sizes = [2, 32], strides = [1, 1]} : vector<2x128xf32> to vector<2x32xf32>
    %cst_150 = arith.constant 0.000000e+00 : f32
    %487 = vector.broadcast %cst_150 : f32 to vector<2x32xf32>
    %488 = arith.subf %487, %486 : vector<2x32xf32>
    %489 = math.exp %488 : vector<2x32xf32>
    %cst_151 = arith.constant 1.000000e+00 : f32
    %490 = vector.broadcast %cst_151 : f32 to vector<2x32xf32>
    %491 = arith.addf %490, %489 : vector<2x32xf32>
    %cst_152 = arith.constant 1.000000e+00 : f32
    %492 = vector.broadcast %cst_152 : f32 to vector<2x32xf32>
    %493 = arith.divf %492, %491 : vector<2x32xf32>
    %494 = vector.extract_strided_slice %485 {offsets = [0, 32], sizes = [2, 32], strides = [1, 1]} : vector<2x128xf32> to vector<2x32xf32>
    %cst_153 = arith.constant 0.000000e+00 : f32
    %495 = vector.broadcast %cst_153 : f32 to vector<2x32xf32>
    %496 = arith.subf %495, %494 : vector<2x32xf32>
    %497 = math.exp %496 : vector<2x32xf32>
    %cst_154 = arith.constant 1.000000e+00 : f32
    %498 = vector.broadcast %cst_154 : f32 to vector<2x32xf32>
    %499 = arith.addf %498, %497 : vector<2x32xf32>
    %cst_155 = arith.constant 1.000000e+00 : f32
    %500 = vector.broadcast %cst_155 : f32 to vector<2x32xf32>
    %501 = arith.divf %500, %499 : vector<2x32xf32>
    %502 = vector.extract_strided_slice %485 {offsets = [0, 64], sizes = [2, 32], strides = [1, 1]} : vector<2x128xf32> to vector<2x32xf32>
    %503 = math.tanh %502 : vector<2x32xf32>
    %504 = vector.extract_strided_slice %485 {offsets = [0, 96], sizes = [2, 32], strides = [1, 1]} : vector<2x128xf32> to vector<2x32xf32>
    %cst_156 = arith.constant 0.000000e+00 : f32
    %505 = vector.broadcast %cst_156 : f32 to vector<2x32xf32>
    %506 = arith.subf %505, %504 : vector<2x32xf32>
    %507 = math.exp %506 : vector<2x32xf32>
    %cst_157 = arith.constant 1.000000e+00 : f32
    %508 = vector.broadcast %cst_157 : f32 to vector<2x32xf32>
    %509 = arith.addf %508, %507 : vector<2x32xf32>
    %cst_158 = arith.constant 1.000000e+00 : f32
    %510 = vector.broadcast %cst_158 : f32 to vector<2x32xf32>
    %511 = arith.divf %510, %509 : vector<2x32xf32>
    %512 = arith.mulf %501, %444 : vector<2x32xf32>
    %513 = arith.mulf %493, %503 : vector<2x32xf32>
    %514 = arith.addf %512, %513 : vector<2x32xf32>
    %515 = math.tanh %514 : vector<2x32xf32>
    %516 = arith.mulf %511, %515 : vector<2x32xf32>
    %c12 = arith.constant 12 : index
    %c0_159 = arith.constant 0 : index
    %517 = vector.load %arg11[%c12, %c0_159] : memref<16x32xf32, #tpu.memory_space<vmem>>, vector<2x32xf32>
    tpu.vector_store %arg11[%c12, %c0_159], %516 {strides = array<i32>} : memref<16x32xf32, #tpu.memory_space<vmem>>, vector<2x32xf32>,
    %518 = vector.extract_strided_slice %482 {offsets = [0, 0], sizes = [2, 128], strides = [1, 1]} : vector<2x256xf32> to vector<2x128xf32>
    %519 = arith.addf %518, %15 : vector<2x128xf32>
    %520 = vector.extract_strided_slice %519 {offsets = [0, 0], sizes = [2, 32], strides = [1, 1]} : vector<2x128xf32> to vector<2x32xf32>
    %cst_160 = arith.constant 0.000000e+00 : f32
    %521 = vector.broadcast %cst_160 : f32 to vector<2x32xf32>
    %522 = arith.subf %521, %520 : vector<2x32xf32>
    %523 = math.exp %522 : vector<2x32xf32>
    %cst_161 = arith.constant 1.000000e+00 : f32
    %524 = vector.broadcast %cst_161 : f32 to vector<2x32xf32>
    %525 = arith.addf %524, %523 : vector<2x32xf32>
    %cst_162 = arith.constant 1.000000e+00 : f32
    %526 = vector.broadcast %cst_162 : f32 to vector<2x32xf32>
    %527 = arith.divf %526, %525 : vector<2x32xf32>
    %528 = vector.extract_strided_slice %519 {offsets = [0, 32], sizes = [2, 32], strides = [1, 1]} : vector<2x128xf32> to vector<2x32xf32>
    %cst_163 = arith.constant 0.000000e+00 : f32
    %529 = vector.broadcast %cst_163 : f32 to vector<2x32xf32>
    %530 = arith.subf %529, %528 : vector<2x32xf32>
    %531 = math.exp %530 : vector<2x32xf32>
    %cst_164 = arith.constant 1.000000e+00 : f32
    %532 = vector.broadcast %cst_164 : f32 to vector<2x32xf32>
    %533 = arith.addf %532, %531 : vector<2x32xf32>
    %cst_165 = arith.constant 1.000000e+00 : f32
    %534 = vector.broadcast %cst_165 : f32 to vector<2x32xf32>
    %535 = arith.divf %534, %533 : vector<2x32xf32>
    %536 = vector.extract_strided_slice %519 {offsets = [0, 64], sizes = [2, 32], strides = [1, 1]} : vector<2x128xf32> to vector<2x32xf32>
    %537 = math.tanh %536 : vector<2x32xf32>
    %538 = vector.extract_strided_slice %519 {offsets = [0, 96], sizes = [2, 32], strides = [1, 1]} : vector<2x128xf32> to vector<2x32xf32>
    %cst_166 = arith.constant 0.000000e+00 : f32
    %539 = vector.broadcast %cst_166 : f32 to vector<2x32xf32>
    %540 = arith.subf %539, %538 : vector<2x32xf32>
    %541 = math.exp %540 : vector<2x32xf32>
    %cst_167 = arith.constant 1.000000e+00 : f32
    %542 = vector.broadcast %cst_167 : f32 to vector<2x32xf32>
    %543 = arith.addf %542, %541 : vector<2x32xf32>
    %cst_168 = arith.constant 1.000000e+00 : f32
    %544 = vector.broadcast %cst_168 : f32 to vector<2x32xf32>
    %545 = arith.divf %544, %543 : vector<2x32xf32>
    %546 = arith.mulf %535, %478 : vector<2x32xf32>
    %547 = arith.mulf %527, %537 : vector<2x32xf32>
    %548 = arith.addf %546, %547 : vector<2x32xf32>
    %549 = math.tanh %548 : vector<2x32xf32>
    %550 = arith.mulf %545, %549 : vector<2x32xf32>
    %551 = tpu.concatenate %550, %516 in 1 : vector<2x32xf32>, vector<2x32xf32> -> vector<2x64xf32>
    %cst_169 = arith.constant dense<0.000000e+00> : vector<2x256xf32>
    %552 = tpu.matmul %551, %16, %cst_169 {dimension_numbers = #tpu.dot_dimension_numbers<[1], [0], [0], [1], [0, 0, 1, 1], [], []>} : vector<2x64xf32>, vector<64x256xf32>, vector<2x256xf32> -> vector<2x256xf32>
    %553 = vector.extract_strided_slice %552 {offsets = [0, 128], sizes = [2, 128], strides = [1, 1]} : vector<2x256xf32> to vector<2x128xf32>
    %554 = vector.broadcast %17 : vector<1x128xf32> to vector<2x128xf32>
    %555 = arith.addf %553, %554 : vector<2x128xf32>
    %556 = vector.extract_strided_slice %555 {offsets = [0, 0], sizes = [2, 32], strides = [1, 1]} : vector<2x128xf32> to vector<2x32xf32>
    %cst_170 = arith.constant 0.000000e+00 : f32
    %557 = vector.broadcast %cst_170 : f32 to vector<2x32xf32>
    %558 = arith.subf %557, %556 : vector<2x32xf32>
    %559 = math.exp %558 : vector<2x32xf32>
    %cst_171 = arith.constant 1.000000e+00 : f32
    %560 = vector.broadcast %cst_171 : f32 to vector<2x32xf32>
    %561 = arith.addf %560, %559 : vector<2x32xf32>
    %cst_172 = arith.constant 1.000000e+00 : f32
    %562 = vector.broadcast %cst_172 : f32 to vector<2x32xf32>
    %563 = arith.divf %562, %561 : vector<2x32xf32>
    %564 = vector.extract_strided_slice %555 {offsets = [0, 32], sizes = [2, 32], strides = [1, 1]} : vector<2x128xf32> to vector<2x32xf32>
    %cst_173 = arith.constant 0.000000e+00 : f32
    %565 = vector.broadcast %cst_173 : f32 to vector<2x32xf32>
    %566 = arith.subf %565, %564 : vector<2x32xf32>
    %567 = math.exp %566 : vector<2x32xf32>
    %cst_174 = arith.constant 1.000000e+00 : f32
    %568 = vector.broadcast %cst_174 : f32 to vector<2x32xf32>
    %569 = arith.addf %568, %567 : vector<2x32xf32>
    %cst_175 = arith.constant 1.000000e+00 : f32
    %570 = vector.broadcast %cst_175 : f32 to vector<2x32xf32>
    %571 = arith.divf %570, %569 : vector<2x32xf32>
    %572 = vector.extract_strided_slice %555 {offsets = [0, 64], sizes = [2, 32], strides = [1, 1]} : vector<2x128xf32> to vector<2x32xf32>
    %573 = math.tanh %572 : vector<2x32xf32>
    %574 = vector.extract_strided_slice %555 {offsets = [0, 96], sizes = [2, 32], strides = [1, 1]} : vector<2x128xf32> to vector<2x32xf32>
    %cst_176 = arith.constant 0.000000e+00 : f32
    %575 = vector.broadcast %cst_176 : f32 to vector<2x32xf32>
    %576 = arith.subf %575, %574 : vector<2x32xf32>
    %577 = math.exp %576 : vector<2x32xf32>
    %cst_177 = arith.constant 1.000000e+00 : f32
    %578 = vector.broadcast %cst_177 : f32 to vector<2x32xf32>
    %579 = arith.addf %578, %577 : vector<2x32xf32>
    %cst_178 = arith.constant 1.000000e+00 : f32
    %580 = vector.broadcast %cst_178 : f32 to vector<2x32xf32>
    %581 = arith.divf %580, %579 : vector<2x32xf32>
    %582 = arith.mulf %571, %514 : vector<2x32xf32>
    %583 = arith.mulf %563, %573 : vector<2x32xf32>
    %584 = arith.addf %582, %583 : vector<2x32xf32>
    %585 = math.tanh %584 : vector<2x32xf32>
    %586 = arith.mulf %581, %585 : vector<2x32xf32>
    %c14 = arith.constant 14 : index
    %c0_179 = arith.constant 0 : index
    %587 = vector.load %arg11[%c14, %c0_179] : memref<16x32xf32, #tpu.memory_space<vmem>>, vector<2x32xf32>
    tpu.vector_store %arg11[%c14, %c0_179], %586 {strides = array<i32>} : memref<16x32xf32, #tpu.memory_space<vmem>>, vector<2x32xf32>,
    %c0_180 = arith.constant 0 : index
    %c0_181 = arith.constant 0 : index
    %588 = vector.load %arg11[%c0_180, %c0_181] : memref<16x32xf32, #tpu.memory_space<vmem>>, vector<16x32xf32>
    %c0_182 = arith.constant 0 : index
    %c0_183 = arith.constant 0 : index
    %589 = vector.load %arg4[%c0_182, %c0_183] : memref<32x128xf32, #tpu.memory_space<vmem>>, vector<32x128xf32>
    %cst_184 = arith.constant dense<0.000000e+00> : vector<16x128xf32>
    %590 = tpu.matmul %588, %589, %cst_184 {dimension_numbers = #tpu.dot_dimension_numbers<[1], [0], [0], [1], [0, 0, 1, 1], [], []>} : vector<16x32xf32>, vector<32x128xf32>, vector<16x128xf32> -> vector<16x128xf32>
    %c0_185 = arith.constant 0 : index
    %c0_186 = arith.constant 0 : index
    %591 = vector.load %arg5[%c0_185, %c0_186] : memref<1x128xf32, #tpu.memory_space<vmem>>, vector<1x128xf32>
    %592 = vector.broadcast %591 : vector<1x128xf32> to vector<16x128xf32>
    %593 = arith.addf %590, %592 : vector<16x128xf32>
    %594 = tpu.iota {dimensions = array<i32: 1>} : vector<16x128xi32>
    %c40_i32 = arith.constant 40 : i32
    %595 = vector.broadcast %c40_i32 : i32 to vector<16x128xi32>
    %596 = arith.cmpi slt, %594, %595 : vector<16x128xi32>
    %cst_187 = arith.constant -3.40282347E+38 : f32
    %597 = vector.broadcast %cst_187 : f32 to vector<16x128xf32>
    %598 = arith.select %596, %593, %597 : vector<16x128xi1>, vector<16x128xf32>
    %cst_188 = arith.constant dense<0xFF800000> : vector<16xf32>
    %599 = vector.multi_reduction <maximumf>, %598, %cst_188 [1] : vector<16x128xf32> to vector<16xf32>
    %600 = vector.shape_cast %599 : vector<16xf32> to vector<16x1xf32>
    %601 = vector.broadcast %600 : vector<16x1xf32> to vector<16x128xf32>
    %602 = arith.subf %598, %601 : vector<16x128xf32>
    %603 = math.exp %602 : vector<16x128xf32>
    %cst_189 = arith.constant dense<0.000000e+00> : vector<16xf32>
    %604 = vector.multi_reduction <add>, %603, %cst_189 [1] : vector<16x128xf32> to vector<16xf32>
    %605 = vector.shape_cast %604 : vector<16xf32> to vector<16x1xf32>
    %606 = vector.broadcast %605 : vector<16x1xf32> to vector<16x128xf32>
    %607 = arith.divf %603, %606 : vector<16x128xf32>
    %c0_190 = arith.constant 0 : index
    %c0_191 = arith.constant 0 : index
    %608 = vector.load %arg8[%c0_190, %c0_191] : memref<16x128xf32, #tpu.memory_space<vmem>>, vector<16x128xf32>
    tpu.vector_store %arg8[%c0_190, %c0_191], %607 {strides = array<i32>} : memref<16x128xf32, #tpu.memory_space<vmem>>, vector<16x128xf32>,
    %c0_192 = arith.constant 0 : index
    %c0_193 = arith.constant 0 : index
    %c0_194 = arith.constant 0 : index
    %609 = vector.load %arg9[%c0_192, %c0_193, %c0_194] : memref<2x2x32xf32, #tpu.memory_space<vmem>>, vector<1x2x32xf32>
    %610 = vector.shape_cast %609 : vector<1x2x32xf32> to vector<2x32xf32>
    %611 = vector.shape_cast %550 : vector<2x32xf32> to vector<1x2x32xf32>
    tpu.vector_store %arg9[%c0_192, %c0_193, %c0_194], %611 {strides = array<i32>} : memref<2x2x32xf32, #tpu.memory_space<vmem>>, vector<1x2x32xf32>,
    %c1_195 = arith.constant 1 : index
    %c0_196 = arith.constant 0 : index
    %c0_197 = arith.constant 0 : index
    %612 = vector.load %arg9[%c1_195, %c0_196, %c0_197] : memref<2x2x32xf32, #tpu.memory_space<vmem>>, vector<1x2x32xf32>
    %613 = vector.shape_cast %612 : vector<1x2x32xf32> to vector<2x32xf32>
    %614 = vector.shape_cast %586 : vector<2x32xf32> to vector<1x2x32xf32>
    tpu.vector_store %arg9[%c1_195, %c0_196, %c0_197], %614 {strides = array<i32>} : memref<2x2x32xf32, #tpu.memory_space<vmem>>, vector<1x2x32xf32>,
    %c0_198 = arith.constant 0 : index
    %c0_199 = arith.constant 0 : index
    %c0_200 = arith.constant 0 : index
    %615 = vector.load %arg10[%c0_198, %c0_199, %c0_200] : memref<2x2x32xf32, #tpu.memory_space<vmem>>, vector<1x2x32xf32>
    %616 = vector.shape_cast %615 : vector<1x2x32xf32> to vector<2x32xf32>
    %617 = vector.shape_cast %548 : vector<2x32xf32> to vector<1x2x32xf32>
    tpu.vector_store %arg10[%c0_198, %c0_199, %c0_200], %617 {strides = array<i32>} : memref<2x2x32xf32, #tpu.memory_space<vmem>>, vector<1x2x32xf32>,
    %c1_201 = arith.constant 1 : index
    %c0_202 = arith.constant 0 : index
    %c0_203 = arith.constant 0 : index
    %618 = vector.load %arg10[%c1_201, %c0_202, %c0_203] : memref<2x2x32xf32, #tpu.memory_space<vmem>>, vector<1x2x32xf32>
    %619 = vector.shape_cast %618 : vector<1x2x32xf32> to vector<2x32xf32>
    %620 = vector.shape_cast %584 : vector<2x32xf32> to vector<1x2x32xf32>
    tpu.vector_store %arg10[%c1_201, %c0_202, %c0_203], %620 {strides = array<i32>} : memref<2x2x32xf32, #tpu.memory_space<vmem>>, vector<1x2x32xf32>,
    return
  }
}

</mosaic_0001>

<llo_original>
// kernel: forward.1
$region0: #{forward.1}
  #allocation0 [shape = 'u32[]', space=smem, size = 0x4, offset = 0x4, fixed_abs, tag = 'smem constant byte address 0x4 - core index']
  #allocation1 [shape = 'u32[144,128]{1,0:T(1,128)}', space=vmem, size = 0x12000, scoped, tag = 'internal scratch']
  #allocation2 [shape = 'f32[16,32]{1,0:T(8,128)}', space=vmem, size = 0x2000, scoped, tag = 'scratch operand']
  %s0 = inlined_call_operand.vmem [shape: s32[16,1], index: 0, kind: input, shape index: {}]
  %s1 = inlined_call_operand.hbm [shape: f32[128,128], index: 1, kind: input, shape index: {}]
  %s2 = inlined_call_operand.hbm [shape: f32[64,256], index: 2, kind: input, shape index: {}]
  %s3 = inlined_call_operand.vmem [shape: f32[1,128], index: 3, kind: input, shape index: {}]
  %s4 = inlined_call_operand.vmem [shape: f32[32,128], index: 4, kind: input, shape index: {}]
  %s5 = inlined_call_operand.vmem [shape: f32[1,128], index: 5, kind: input, shape index: {}]
  %s6 = inlined_call_operand.vmem [shape: f32[2,2,32], index: 6, kind: input, shape index: {}]
  %s7 = inlined_call_operand.vmem [shape: f32[2,2,32], index: 7, kind: input, shape index: {}]
  %s8 = inlined_call_operand.hbm [shape: f32[16,128], index: 8, kind: output, shape index: {0}]
  %s9 = inlined_call_operand.hbm [shape: f32[2,2,32], index: 9, kind: output, shape index: {1}]
  %s10 = inlined_call_operand.hbm [shape: f32[2,2,32], index: 10, kind: output, shape index: {2}]
  %11 = xla_tuple %s8, %s9, %s10
  %s12 = sld [smem:[#allocation0]]
  $region66: #{forward.1} parent=0
    _
  %s14 = ssub.s32 1, %s12
  %s15 = scalar_select 0, %s14, %s12
  $region1: #{forward.1} parent=0
    #allocation3 [shape = 'u8[65536]{0}', space=vmem, size = 0x10000, scoped, tag = 'input window, operand 1, single buffered']
    #allocation4 [shape = 's32[1]{0}', space=sflag, size = 0x4, scoped, tag = 'scoped memory for forward.1']
    #allocation5 [shape = 's32[1]{0}', space=sflag, size = 0x4, scoped, tag = 'scoped memory for forward.1']
    #allocation6 [shape = 'u8[65536]{0}', space=vmem, size = 0x10000, scoped, tag = 'input window, operand 2, single buffered']
    #allocation7 [shape = 's32[1]{0}', space=sflag, size = 0x4, scoped, tag = 'scoped memory for forward.1']
    #allocation8 [shape = 'u8[8192]{0}', space=vmem, size = 0x2000, scoped, tag = 'output window, operand 0, single buffered']
    #allocation9 [shape = 'u8[2048]{0}', space=vmem, size = 0x800, scoped, tag = 'output window, operand 1, single buffered']
    #allocation10 [shape = 's32[1]{0}', space=sflag, size = 0x4, scoped, tag = 'scoped memory for forward.1']
    #allocation11 [shape = 'u8[2048]{0}', space=vmem, size = 0x800, scoped, tag = 'output window, operand 2, single buffered']
    %16 = vsyncpa [#allocation4], 0
    %17 = vsyncpa [#allocation7], 0
    %18 = vsyncpa [#allocation5], 0
    %19 = vsyncpa [#allocation10], 0
    // Predicated region
    $region2: #{forward.1} parent=1 // pred_check
      _
    $region3: #{forward.1} parent=1 // pred_check_branch
      %21 = sbr.rel (0) target = $region5
    $region4: #{forward.1} parent=1 // pred_region
      _
    $region5: #{forward.1} parent=1 // pred_fallthru
      _
    // Predicated region
    $region6: #{forward.1} parent=1 // pred_check
      _
    $region7: #{forward.1} parent=1 // pred_check_branch
      %23 = sbr.rel (0) target = $region9
    $region8: #{forward.1} parent=1 // pred_region
      %s25 = ssub.s32 2048, 2048
      %26 = vsyncadd [#allocation4], %s25
      %s27 = sshll.u32 [#allocation3], 4
      %s28 = int_to_ptr.vmem [resolvable:$true] %s27
      %33 = dma.hbm_to_vmem [thread:$0]  %s1, 2048, %s28, [#allocation4], 128, 128, 8
    $region9: #{forward.1} parent=1 // pred_fallthru
      _
    // Predicated region
    $region10: #{forward.1} parent=1 // pred_check
      _
    $region11: #{forward.1} parent=1 // pred_check_branch
      %35 = sbr.rel (0) target = $region13
    $region12: #{forward.1} parent=1 // pred_region
      %s37 = ssub.s32 2048, 2048
      %38 = vsyncadd [#allocation7], %s37
      %s39 = sshll.u32 [#allocation6], 4
      %s40 = int_to_ptr.vmem [resolvable:$true] %s39
      %45 = dma.hbm_to_vmem [thread:$0]  %s2, 2048, %s40, [#allocation7], 256, 256, 16
    $region13: #{forward.1} parent=1 // pred_fallthru
      _
    // Predicated region
    $region14: #{forward.1} parent=1 // pred_check
      _
    $region15: #{forward.1} parent=1 // pred_check_branch
      %47 = sbr.rel (0) target = $region17
    $region16: #{forward.1} parent=1 // pred_region
      _
    $region17: #{forward.1} parent=1 // pred_fallthru
      _
    // Predicated region
    $region18: #{forward.1} parent=1 // pred_check
      _
    $region19: #{forward.1} parent=1 // pred_check_branch
      %49 = sbr.rel (0) target = $region21
    $region20: #{forward.1} parent=1 // pred_region
      _
    $region21: #{forward.1} parent=1 // pred_fallthru
      _
    // Predicated region
    $region22: #{forward.1} parent=1 // pred_check
      _
    $region23: #{forward.1} parent=1 // pred_check_branch
      %51 = sbr.rel (0) target = $region25
    $region24: #{forward.1} parent=1 // pred_region
      _
    $region25: #{forward.1} parent=1 // pred_fallthru
      _
    // Predicated region
    $region26: #{forward.1} parent=1 // pred_check
      _
    $region27: #{forward.1} parent=1 // pred_check_branch
      %53 = sbr.rel (0) target = $region29
    $region28: #{forward.1} parent=1 // pred_region
      _
    $region29: #{forward.1} parent=1 // pred_fallthru
      _
    // Predicated region
    $region30: #{forward.1} parent=1 // pred_check
      _
    $region31: #{forward.1} parent=1 // pred_check_branch
      %55 = sbr.rel (0) target = $region33
    $region32: #{forward.1} parent=1 // pred_region
      _
    $region33: #{forward.1} parent=1 // pred_fallthru
      _
    // Predicated region
    $region34: #{forward.1} parent=1 // pred_check
      _
    $region35: #{forward.1} parent=1 // pred_check_branch
      %57 = sbr.rel (0) target = $region37
    $region36: #{forward.1} parent=1 // pred_region
      %58 = dma.done [#allocation4], 2048
    $region37: #{forward.1} parent=1 // pred_fallthru
      _
    // Predicated region
    $region38: #{forward.1} parent=1 // pred_check
      _
    $region39: #{forward.1} parent=1 // pred_check_branch
      %60 = sbr.rel (0) target = $region41
    $region40: #{forward.1} parent=1 // pred_region
      %61 = dma.done [#allocation7], 2048
    $region41: #{forward.1} parent=1 // pred_fallthru
      _
    %v62 = vld [vmem:[%s0] sm:$0xff]
    %v63 = vld [vmem:[%s0 + $0x8] sm:$0xff]
    %v64 = vlaneseq
    %v65 = vand.u32 %v64, 127
    %66 = vset.pattern.permute.xlu0 0
    %67 = vperm.xlu0 %66, %v62
    %v68 = vpop.permute.xlu0 %67
    %69 = vset.pattern.permute.xlu0 0
    %70 = vperm.xlu0 %69, %v63
    %v71 = vpop.permute.xlu0 %70
    %vm72 = vcmp.eq.s32.totalorder %v68, %v65
    %vm73 = vcmp.eq.s32.totalorder %v71, %v65
    %v74 = vsel %vm72, 1, 0
    %v75 = vsel %vm73, 1, 0
    %v76 = vcvt.s32.f32 %v74
    %v77 = vcvt.s32.f32 %v75
    %v78 = vld [vmem:[#allocation3] sm:$0xff]
    %v79 = vld [vmem:[#allocation3 + $0x8] sm:$0xff]
    %v80 = vld [vmem:[#allocation3 + $0x10] sm:$0xff]
    %v81 = vld [vmem:[#allocation3 + $0x18] sm:$0xff]
    %v82 = vld [vmem:[#allocation3 + $0x20] sm:$0xff]
    %v83 = vld [vmem:[#allocation3 + $0x28] sm:$0xff]
    %v84 = vld [vmem:[#allocation3 + $0x30] sm:$0xff]
    %v85 = vld [vmem:[#allocation3 + $0x38] sm:$0xff]
    %v86 = vld [vmem:[#allocation3 + $0x40] sm:$0xff]
    %v87 = vld [vmem:[#allocation3 + $0x48] sm:$0xff]
    %v88 = vld [vmem:[#allocation3 + $0x50] sm:$0xff]
    %v89 = vld [vmem:[#allocation3 + $0x58] sm:$0xff]
    %v90 = vld [vmem:[#allocation3 + $0x60] sm:$0xff]
    %v91 = vld [vmem:[#allocation3 + $0x68] sm:$0xff]
    %v92 = vld [vmem:[#allocation3 + $0x70] sm:$0xff]
    %v93 = vld [vmem:[#allocation3 + $0x78] sm:$0xff]
    %94 = vmatprep.subr.mxu0 0.0
    %95 = vmatpush1.msra.mxu0 %v78
    %96 = vmatprep.subr.mxu0 0.0
    %97 = vmatpush1.msra.mxu0 %v79
    %98 = vmatprep.subr.mxu0 0.0
    %99 = vmatpush1.msra.mxu0 %v80
    %100 = vmatprep.subr.mxu0 0.0
    %101 = vmatpush1.msra.mxu0 %v81
    %102 = vmatprep.subr.mxu0 0.0
    %103 = vmatpush1.msra.mxu0 %v82
    %104 = vmatprep.subr.mxu0 0.0
    %105 = vmatpush1.msra.mxu0 %v83
    %106 = vmatprep.subr.mxu0 0.0
    %107 = vmatpush1.msra.mxu0 %v84
    %108 = vmatprep.subr.mxu0 0.0
    %109 = vmatpush1.msra.mxu0 %v85
    %110 = vmatprep.subr.mxu0 0.0
    %111 = vmatpush1.msra.mxu0 %v86
    %112 = vmatprep.subr.mxu0 0.0
    %113 = vmatpush1.msra.mxu0 %v87
    %114 = vmatprep.subr.mxu0 0.0
    %115 = vmatpush1.msra.mxu0 %v88
    %116 = vmatprep.subr.mxu0 0.0
    %117 = vmatpush1.msra.mxu0 %v89
    %118 = vmatprep.subr.mxu0 0.0
    %119 = vmatpush1.msra.mxu0 %v90
    %120 = vmatprep.subr.mxu0 0.0
    %121 = vmatpush1.msra.mxu0 %v91
    %122 = vmatprep.subr.mxu0 0.0
    %123 = vmatpush1.msra.mxu0 %v92
    %124 = vmatprep.subr.mxu0 0.0
    %125 = vmatpush1.msra.mxu0 %v93
    %126 = vmatprep.subr.mxu0 0.0
    %127 = vmatpush1.msra.mxu0 0.0
    %128 = vmatprep.subr.mxu0 0.0
    %129 = vmatpush1.msra.mxu0 0.0
    %130 = vmatprep.subr.mxu0 0.0
    %131 = vmatpush1.msra.mxu0 0.0
    %132 = vmatprep.subr.mxu0 0.0
    %133 = vmatpush1.msra.mxu0 0.0
    %134 = vmatprep.subr.mxu0 0.0
    %135 = vmatpush1.msra.mxu0 0.0
    %136 = vmatprep.subr.mxu0 0.0
    %137 = vmatpush1.msra.mxu0 0.0
    %138 = vmatprep.subr.mxu0 0.0
    %139 = vmatpush1.msra.mxu0 0.0
    %140 = vmatprep.subr.mxu0 0.0
    %141 = vmatpush1.msra.mxu0 0.0
    %142 = vmatprep.subr.mxu0 0.0
    %143 = vmatpush1.msra.mxu0 0.0
    %144 = vmatprep.subr.mxu0 0.0
    %145 = vmatpush1.msra.mxu0 0.0
    %146 = vmatprep.subr.mxu0 0.0
    %147 = vmatpush1.msra.mxu0 0.0
    %148 = vmatprep.subr.mxu0 0.0
    %149 = vmatpush1.msra.mxu0 0.0
    %150 = vmatprep.subr.mxu0 0.0
    %151 = vmatpush1.msra.mxu0 0.0
    %152 = vmatprep.subr.mxu0 0.0
    %153 = vmatpush1.msra.mxu0 0.0
    %154 = vmatprep.subr.mxu0 0.0
    %155 = vmatpush1.msra.mxu0 0.0
    %156 = vmatprep.subr.mxu0 0.0
    %157 = vmatpush1.msra.mxu0 0.0
    %158 = vmatprep.mubr.f32.mxu0 0.0
    %159 = vmatmul.mubr.f32.gmra.mrb[0].mxu0 %v76
    %v160 = vpop.f32.mrb[0].mxu0
    %v161 = vadd.f32 0.0, %v160
    %v162 = vpop.f32.mrb[0].mxu0
    %163 = vmatprep.mubr.f32.mxu0 0.0
    %164 = vmatmul.mubr.f32.gmra.mrb[0].mxu0 %v77
    %v165 = vpop.f32.mrb[0].mxu0
    %v166 = vadd.f32 0.0, %v165
    %v167 = vpop.f32.mrb[0].mxu0
    %168 = vdwg.mxu0
    %v169 = vld [vmem:[#allocation6] sm:$0xff]
    %v170 = vld [vmem:[#allocation6 + $0x8] sm:$0xff]
    %v171 = vld [vmem:[#allocation6 + $0x10] sm:$0xff]
    %v172 = vld [vmem:[#allocation6 + $0x18] sm:$0xff]
    %v173 = vld [vmem:[#allocation6 + $0x20] sm:$0xff]
    %v174 = vld [vmem:[#allocation6 + $0x28] sm:$0xff]
    %v175 = vld [vmem:[#allocation6 + $0x30] sm:$0xff]
    %v176 = vld [vmem:[#allocation6 + $0x38] sm:$0xff]
    %v177 = vld [vmem:[#allocation6 + $0x40] sm:$0xff]
    %v178 = vld [vmem:[#allocation6 + $0x48] sm:$0xff]
    %v179 = vld [vmem:[#allocation6 + $0x50] sm:$0xff]
    %v180 = vld [vmem:[#allocation6 + $0x58] sm:$0xff]
    %v181 = vld [vmem:[#allocation6 + $0x60] sm:$0xff]
    %v182 = vld [vmem:[#allocation6 + $0x68] sm:$0xff]
    %v183 = vld [vmem:[#allocation6 + $0x70] sm:$0xff]
    %v184 = vld [vmem:[#allocation6 + $0x78] sm:$0xff]
    %v185 = vld [vmem:[%s3] sm:$0x1]
    %v186 = vld [vmem:[%s6] sm:$0x3]
    %v187 = vld [vmem:[%s7] sm:$0x3]
    %s188 = scalar_lea.vmem %s6, 2
    %v189 = vld [vmem:[%s188] sm:$0x3]
    %s190 = scalar_lea.vmem %s7, 2
    %v191 = vld [vmem:[%s190] sm:$0x3]
    %193 = vrot.lane.b32.xlu0 %v189, 32
    %v194 = vpop.permute.xlu0 %193
    %vm196 = vcmask 261120
    %v197 = vsel %vm196, %v186, %v194
    %vm198 = vcmask 523264
    %v200 = vsel %vm198, %v197, 0
    %202 = vmatprep.subr.mxu0 %v170
    %203 = vmatpush1.msra.mxu0 %v169
    %204 = vmatprep.subr.mxu0 %v172
    %205 = vmatpush1.msra.mxu0 %v171
    %206 = vmatprep.subr.mxu0 %v174
    %207 = vmatpush1.msra.mxu0 %v173
    %208 = vmatprep.subr.mxu0 %v176
    %209 = vmatpush1.msra.mxu0 %v175
    %210 = vmatprep.subr.mxu0 %v178
    %211 = vmatpush1.msra.mxu0 %v177
    %212 = vmatprep.subr.mxu0 %v180
    %213 = vmatpush1.msra.mxu0 %v179
    %214 = vmatprep.subr.mxu0 %v182
    %215 = vmatpush1.msra.mxu0 %v181
    %216 = vmatprep.subr.mxu0 %v184
    %217 = vmatpush1.msra.mxu0 %v183
    %218 = vmatprep.subr.mxu0 0.0
    %219 = vmatpush1.msra.mxu0 0.0
    %220 = vmatprep.subr.mxu0 0.0
    %221 = vmatpush1.msra.mxu0 0.0
    %222 = vmatprep.subr.mxu0 0.0
    %223 = vmatpush1.msra.mxu0 0.0
    %224 = vmatprep.subr.mxu0 0.0
    %225 = vmatpush1.msra.mxu0 0.0
    %226 = vmatprep.subr.mxu0 0.0
    %227 = vmatpush1.msra.mxu0 0.0
    %228 = vmatprep.subr.mxu0 0.0
    %229 = vmatpush1.msra.mxu0 0.0
    %230 = vmatprep.subr.mxu0 0.0
    %231 = vmatpush1.msra.mxu0 0.0
    %232 = vmatprep.subr.mxu0 0.0
    %233 = vmatpush1.msra.mxu0 0.0
    %234 = vmatprep.subr.mxu0 0.0
    %235 = vmatpush1.msra.mxu0 0.0
    %236 = vmatprep.subr.mxu0 0.0
    %237 = vmatpush1.msra.mxu0 0.0
    %238 = vmatprep.subr.mxu0 0.0
    %239 = vmatpush1.msra.mxu0 0.0
    %240 = vmatprep.subr.mxu0 0.0
    %241 = vmatpush1.msra.mxu0 0.0
    %242 = vmatprep.subr.mxu0 0.0
    %243 = vmatpush1.msra.mxu0 0.0
    %244 = vmatprep.subr.mxu0 0.0
    %245 = vmatpush1.msra.mxu0 0.0
    %246 = vmatprep.subr.mxu0 0.0
    %247 = vmatpush1.msra.mxu0 0.0
    %248 = vmatprep.subr.mxu0 0.0
    %249 = vmatpush1.msra.mxu0 0.0
    %250 = vmatprep.subr.mxu0 0.0
    %251 = vmatpush1.msra.mxu0 0.0
    %252 = vmatprep.subr.mxu0 0.0
    %253 = vmatpush1.msra.mxu0 0.0
    %254 = vmatprep.subr.mxu0 0.0
    %255 = vmatpush1.msra.mxu0 0.0
    %256 = vmatprep.subr.mxu0 0.0
    %257 = vmatpush1.msra.mxu0 0.0
    %258 = vmatprep.subr.mxu0 0.0
    %259 = vmatpush1.msra.mxu0 0.0
    %260 = vmatprep.subr.mxu0 0.0
    %261 = vmatpush1.msra.mxu0 0.0
    %262 = vmatprep.subr.mxu0 0.0
    %263 = vmatpush1.msra.mxu0 0.0
    %264 = vmatprep.subr.mxu0 0.0
    %265 = vmatpush1.msra.mxu0 0.0
    %266 = vmatprep.mubr.f32.mxu0 0.0
    %267 = vmatmul.mubr.f32.gmra.mrb[0].mxu0 %v200
    %v268 = vpop.f32.mrb[0].mxu0
    %v269 = vadd.f32 0.0, %v268
    %v270 = vpop.f32.mrb[0].mxu0
    %271 = vdwg.mxu0
    %v272 = vadd.f32 %v269, %v161
    %v273 = vsub.f32 0.0, %v272
    %v274 = vmul.f32 %v273, 1.442695
    %v275 = vpow.pop %v274
    %v276 = vadd.f32 %v275, 1.0
    %v277 = vrcp.pop %v276
    %v278 = vmul.f32 1.0, %v277
    %v279 = vtanh.pop %v272
    %281 = vrot.lane.b32.xlu0 %v187, 32
    %v282 = vpop.permute.xlu0 %281
    %v284 = vmul.f32 %v278, %v282
    %286 = vrot.lane.b32.xlu0 %v279, 64
    %v287 = vpop.permute.xlu0 %286
    %v289 = vmul.f32 %v278, %v287
    %291 = vrot.lane.b32.xlu0 %v289, 32
    %v292 = vpop.permute.xlu0 %291
    %v294 = vadd.f32 %v284, %v292
    %v295 = vtanh.pop %v294
    %297 = vrot.lane.b32.xlu0 %v295, 64
    %v298 = vpop.permute.xlu0 %297
    %v300 = vmul.f32 %v278, %v298
    %302 = vrot.lane.b32.xlu0 %v300, 32
    %v303 = vpop.permute.xlu0 %302
    %v305 = vsel %vm196, %v303, %v194
    %v307 = vsel %vm198, %v305, 0
    %309 = vmatprep.subr.mxu0 %v170
    %310 = vmatpush1.msra.mxu0 %v169
    %311 = vmatprep.subr.mxu0 %v172
    %312 = vmatpush1.msra.mxu0 %v171
    %313 = vmatprep.subr.mxu0 %v174
    %314 = vmatpush1.msra.mxu0 %v173
    %315 = vmatprep.subr.mxu0 %v176
    %316 = vmatpush1.msra.mxu0 %v175
    %317 = vmatprep.subr.mxu0 %v178
    %318 = vmatpush1.msra.mxu0 %v177
    %319 = vmatprep.subr.mxu0 %v180
    %320 = vmatpush1.msra.mxu0 %v179
    %321 = vmatprep.subr.mxu0 %v182
    %322 = vmatpush1.msra.mxu0 %v181
    %323 = vmatprep.subr.mxu0 %v184
    %324 = vmatpush1.msra.mxu0 %v183
    %325 = vmatprep.subr.mxu0 0.0
    %326 = vmatpush1.msra.mxu0 0.0
    %327 = vmatprep.subr.mxu0 0.0
    %328 = vmatpush1.msra.mxu0 0.0
    %329 = vmatprep.subr.mxu0 0.0
    %330 = vmatpush1.msra.mxu0 0.0
    %331 = vmatprep.subr.mxu0 0.0
    %332 = vmatpush1.msra.mxu0 0.0
    %333 = vmatprep.subr.mxu0 0.0
    %334 = vmatpush1.msra.mxu0 0.0
    %335 = vmatprep.subr.mxu0 0.0
    %336 = vmatpush1.msra.mxu0 0.0
    %337 = vmatprep.subr.mxu0 0.0
    %338 = vmatpush1.msra.mxu0 0.0
    %339 = vmatprep.subr.mxu0 0.0
    %340 = vmatpush1.msra.mxu0 0.0
    %341 = vmatprep.subr.mxu0 0.0
    %342 = vmatpush1.msra.mxu0 0.0
    %343 = vmatprep.subr.mxu0 0.0
    %344 = vmatpush1.msra.mxu0 0.0
    %345 = vmatprep.subr.mxu0 0.0
    %346 = vmatpush1.msra.mxu0 0.0
    %347 = vmatprep.subr.mxu0 0.0
    %348 = vmatpush1.msra.mxu0 0.0
    %349 = vmatprep.subr.mxu0 0.0
    %350 = vmatpush1.msra.mxu0 0.0
    %351 = vmatprep.subr.mxu0 0.0
    %352 = vmatpush1.msra.mxu0 0.0
    %353 = vmatprep.subr.mxu0 0.0
    %354 = vmatpush1.msra.mxu0 0.0
    %355 = vmatprep.subr.mxu0 0.0
    %356 = vmatpush1.msra.mxu0 0.0
    %357 = vmatprep.subr.mxu0 0.0
    %358 = vmatpush1.msra.mxu0 0.0
    %359 = vmatprep.subr.mxu0 0.0
    %360 = vmatpush1.msra.mxu0 0.0
    %361 = vmatprep.subr.mxu0 0.0
    %362 = vmatpush1.msra.mxu0 0.0
    %363 = vmatprep.subr.mxu0 0.0
    %364 = vmatpush1.msra.mxu0 0.0
    %365 = vmatprep.subr.mxu0 0.0
    %366 = vmatpush1.msra.mxu0 0.0
    %367 = vmatprep.subr.mxu0 0.0
    %368 = vmatpush1.msra.mxu0 0.0
    %369 = vmatprep.subr.mxu0 0.0
    %370 = vmatpush1.msra.mxu0 0.0
    %371 = vmatprep.subr.mxu0 0.0
    %372 = vmatpush1.msra.mxu0 0.0
    %373 = vmatprep.mubr.f32.mxu0 0.0
    %374 = vmatmul.mubr.f32.gmra.mrb[0].mxu0 %v307
    %v375 = vpop.f32.mrb[0].mxu0
    %v376 = vadd.f32 0.0, %v375
    %v377 = vpop.f32.mrb[0].mxu0
    %v378 = vadd.f32 0.0, %v377
    %379 = vdwg.mxu0
    %v381 = vlaneseq
    %v382 = vshrl.u32 %v381, 7
    %v383 = vsub.s32 0, %v382
    %v384 = vrot.slane %v185, %v383
    %v386 = vadd.f32 %v378, %v384
    %v387 = vsub.f32 0.0, %v386
    %v388 = vmul.f32 %v387, 1.442695
    %v389 = vpow.pop %v388
    %v390 = vadd.f32 %v389, 1.0
    %v391 = vrcp.pop %v390
    %v392 = vmul.f32 1.0, %v391
    %v393 = vtanh.pop %v386
    %395 = vrot.lane.b32.xlu0 %v191, 32
    %v396 = vpop.permute.xlu0 %395
    %v398 = vmul.f32 %v392, %v396
    %400 = vrot.lane.b32.xlu0 %v393, 64
    %v401 = vpop.permute.xlu0 %400
    %v403 = vmul.f32 %v392, %v401
    %405 = vrot.lane.b32.xlu0 %v403, 32
    %v406 = vpop.permute.xlu0 %405
    %v408 = vadd.f32 %v398, %v406
    %v409 = vtanh.pop %v408
    %411 = vrot.lane.b32.xlu0 %v409, 64
    %v412 = vpop.permute.xlu0 %411
    %v414 = vmul.f32 %v392, %v412
    %416 = vrot.lane.b32.xlu0 %v414, 32
    %v417 = vpop.permute.xlu0 %416
    %vm419 = vcmask 254976
    %420 = vst.msk [vmem:[#allocation2] sm:$0x3] %vm419, %v417
    %v422 = vrot.slane %v161, 2
    %v424 = vadd.f32 %v376, %v422
    %v425 = vsub.f32 0.0, %v424
    %v426 = vmul.f32 %v425, 1.442695
    %v427 = vpow.pop %v426
    %v428 = vadd.f32 %v427, 1.0
    %v429 = vrcp.pop %v428
    %v430 = vmul.f32 1.0, %v429
    %v431 = vtanh.pop %v424
    %v432 = vmul.f32 %v430, %v294
    %434 = vrot.lane.b32.xlu0 %v431, 64
    %v435 = vpop.permute.xlu0 %434
    %v437 = vmul.f32 %v430, %v435
    %439 = vrot.lane.b32.xlu0 %v437, 32
    %v440 = vpop.permute.xlu0 %439
    %v442 = vadd.f32 %v432, %v440
    %v443 = vtanh.pop %v442
    %445 = vrot.lane.b32.xlu0 %v443, 64
    %v446 = vpop.permute.xlu0 %445
    %v448 = vmul.f32 %v430, %v446
    %450 = vrot.lane.b32.xlu0 %v448, 32
    %v451 = vpop.permute.xlu0 %450
    %453 = vrot.lane.b32.xlu0 %v414, 64
    %v454 = vpop.permute.xlu0 %453
    %v456 = vsel %vm196, %v451, %v454
    %v458 = vsel %vm198, %v456, 0
    %460 = vmatprep.subr.mxu0 %v170
    %461 = vmatpush1.msra.mxu0 %v169
    %462 = vmatprep.subr.mxu0 %v172
    %463 = vmatpush1.msra.mxu0 %v171
    %464 = vmatprep.subr.mxu0 %v174
    %465 = vmatpush1.msra.mxu0 %v173
    %466 = vmatprep.subr.mxu0 %v176
    %467 = vmatpush1.msra.mxu0 %v175
    %468 = vmatprep.subr.mxu0 %v178
    %469 = vmatpush1.msra.mxu0 %v177
    %470 = vmatprep.subr.mxu0 %v180
    %471 = vmatpush1.msra.mxu0 %v179
    %472 = vmatprep.subr.mxu0 %v182
    %473 = vmatpush1.msra.mxu0 %v181
    %474 = vmatprep.subr.mxu0 %v184
    %475 = vmatpush1.msra.mxu0 %v183
    %476 = vmatprep.subr.mxu0 0.0
    %477 = vmatpush1.msra.mxu0 0.0
    %478 = vmatprep.subr.mxu0 0.0
    %479 = vmatpush1.msra.mxu0 0.0
    %480 = vmatprep.subr.mxu0 0.0
    %481 = vmatpush1.msra.mxu0 0.0
    %482 = vmatprep.subr.mxu0 0.0
    %483 = vmatpush1.msra.mxu0 0.0
    %484 = vmatprep.subr.mxu0 0.0
    %485 = vmatpush1.msra.mxu0 0.0
    %486 = vmatprep.subr.mxu0 0.0
    %487 = vmatpush1.msra.mxu0 0.0
    %488 = vmatprep.subr.mxu0 0.0
    %489 = vmatpush1.msra.mxu0 0.0
    %490 = vmatprep.subr.mxu0 0.0
    %491 = vmatpush1.msra.mxu0 0.0
    %492 = vmatprep.subr.mxu0 0.0
    %493 = vmatpush1.msra.mxu0 0.0
    %494 = vmatprep.subr.mxu0 0.0
    %495 = vmatpush1.msra.mxu0 0.0
    %496 = vmatprep.subr.mxu0 0.0
    %497 = vmatpush1.msra.mxu0 0.0
    %498 = vmatprep.subr.mxu0 0.0
    %499 = vmatpush1.msra.mxu0 0.0
    %500 = vmatprep.subr.mxu0 0.0
    %501 = vmatpush1.msra.mxu0 0.0
    %502 = vmatprep.subr.mxu0 0.0
    %503 = vmatpush1.msra.mxu0 0.0
    %504 = vmatprep.subr.mxu0 0.0
    %505 = vmatpush1.msra.mxu0 0.0
    %506 = vmatprep.subr.mxu0 0.0
    %507 = vmatpush1.msra.mxu0 0.0
    %508 = vmatprep.subr.mxu0 0.0
    %509 = vmatpush1.msra.mxu0 0.0
    %510 = vmatprep.subr.mxu0 0.0
    %511 = vmatpush1.msra.mxu0 0.0
    %512 = vmatprep.subr.mxu0 0.0
    %513 = vmatpush1.msra.mxu0 0.0
    %514 = vmatprep.subr.mxu0 0.0
    %515 = vmatpush1.msra.mxu0 0.0
    %516 = vmatprep.subr.mxu0 0.0
    %517 = vmatpush1.msra.mxu0 0.0
    %518 = vmatprep.subr.mxu0 0.0
    %519 = vmatpush1.msra.mxu0 0.0
    %520 = vmatprep.subr.mxu0 0.0
    %521 = vmatpush1.msra.mxu0 0.0
    %522 = vmatprep.subr.mxu0 0.0
    %523 = vmatpush1.msra.mxu0 0.0
    %524 = vmatprep.mubr.f32.mxu0 0.0
    %525 = vmatmul.mubr.f32.gmra.mrb[0].mxu0 %v458
    %v526 = vpop.f32.mrb[0].mxu0
    %v527 = vadd.f32 0.0, %v526
    %v528 = vpop.f32.mrb[0].mxu0
    %v529 = vadd.f32 0.0, %v528
    %530 = vdwg.mxu0
    %v531 = vadd.f32 %v529, %v384
    %v532 = vsub.f32 0.0, %v531
    %v533 = vmul.f32 %v532, 1.442695
    %v534 = vpow.pop %v533
    %v535 = vadd.f32 %v534, 1.0
    %v536 = vrcp.pop %v535
    %v537 = vmul.f32 1.0, %v536
    %v538 = vtanh.pop %v531
    %v539 = vmul.f32 %v537, %v408
    %541 = vrot.lane.b32.xlu0 %v538, 64
    %v542 = vpop.permute.xlu0 %541
    %v544 = vmul.f32 %v537, %v542
    %546 = vrot.lane.b32.xlu0 %v544, 32
    %v547 = vpop.permute.xlu0 %546
    %v549 = vadd.f32 %v539, %v547
    %v550 = vtanh.pop %v549
    %552 = vrot.lane.b32.xlu0 %v550, 64
    %v553 = vpop.permute.xlu0 %552
    %v555 = vmul.f32 %v537, %v553
    %557 = vrot.lane.b32.xlu0 %v555, 32
    %v558 = vpop.permute.xlu0 %557
    %560 = vst.msk [vmem:[#allocation2 + $0x2] sm:$0x3] %vm419, %v558
    %v561 = vrot.slane %v161, 4
    %v563 = vadd.f32 %v527, %v561
    %v564 = vsub.f32 0.0, %v563
    %v565 = vmul.f32 %v564, 1.442695
    %v566 = vpow.pop %v565
    %v567 = vadd.f32 %v566, 1.0
    %v568 = vrcp.pop %v567
    %v569 = vmul.f32 1.0, %v568
    %v570 = vtanh.pop %v563
    %v571 = vmul.f32 %v569, %v442
    %573 = vrot.lane.b32.xlu0 %v570, 64
    %v574 = vpop.permute.xlu0 %573
    %v576 = vmul.f32 %v569, %v574
    %578 = vrot.lane.b32.xlu0 %v576, 32
    %v579 = vpop.permute.xlu0 %578
    %v581 = vadd.f32 %v571, %v579
    %v582 = vtanh.pop %v581
    %584 = vrot.lane.b32.xlu0 %v582, 64
    %v585 = vpop.permute.xlu0 %584
    %v587 = vmul.f32 %v569, %v585
    %589 = vrot.lane.b32.xlu0 %v587, 32
    %v590 = vpop.permute.xlu0 %589
    %592 = vrot.lane.b32.xlu0 %v555, 64
    %v593 = vpop.permute.xlu0 %592
    %v595 = vsel %vm196, %v590, %v593
    %v597 = vsel %vm198, %v595, 0
    %599 = vmatprep.subr.mxu0 %v170
    %600 = vmatpush1.msra.mxu0 %v169
    %601 = vmatprep.subr.mxu0 %v172
    %602 = vmatpush1.msra.mxu0 %v171
    %603 = vmatprep.subr.mxu0 %v174
    %604 = vmatpush1.msra.mxu0 %v173
    %605 = vmatprep.subr.mxu0 %v176
    %606 = vmatpush1.msra.mxu0 %v175
    %607 = vmatprep.subr.mxu0 %v178
    %608 = vmatpush1.msra.mxu0 %v177
    %609 = vmatprep.subr.mxu0 %v180
    %610 = vmatpush1.msra.mxu0 %v179
    %611 = vmatprep.subr.mxu0 %v182
    %612 = vmatpush1.msra.mxu0 %v181
    %613 = vmatprep.subr.mxu0 %v184
    %614 = vmatpush1.msra.mxu0 %v183
    %615 = vmatprep.subr.mxu0 0.0
    %616 = vmatpush1.msra.mxu0 0.0
    %617 = vmatprep.subr.mxu0 0.0
    %618 = vmatpush1.msra.mxu0 0.0
    %619 = vmatprep.subr.mxu0 0.0
    %620 = vmatpush1.msra.mxu0 0.0
    %621 = vmatprep.subr.mxu0 0.0
    %622 = vmatpush1.msra.mxu0 0.0
    %623 = vmatprep.subr.mxu0 0.0
    %624 = vmatpush1.msra.mxu0 0.0
    %625 = vmatprep.subr.mxu0 0.0
    %626 = vmatpush1.msra.mxu0 0.0
    %627 = vmatprep.subr.mxu0 0.0
    %628 = vmatpush1.msra.mxu0 0.0
    %629 = vmatprep.subr.mxu0 0.0
    %630 = vmatpush1.msra.mxu0 0.0
    %631 = vmatprep.subr.mxu0 0.0
    %632 = vmatpush1.msra.mxu0 0.0
    %633 = vmatprep.subr.mxu0 0.0
    %634 = vmatpush1.msra.mxu0 0.0
    %635 = vmatprep.subr.mxu0 0.0
    %636 = vmatpush1.msra.mxu0 0.0
    %637 = vmatprep.subr.mxu0 0.0
    %638 = vmatpush1.msra.mxu0 0.0
    %639 = vmatprep.subr.mxu0 0.0
    %640 = vmatpush1.msra.mxu0 0.0
    %641 = vmatprep.subr.mxu0 0.0
    %642 = vmatpush1.msra.mxu0 0.0
    %643 = vmatprep.subr.mxu0 0.0
    %644 = vmatpush1.msra.mxu0 0.0
    %645 = vmatprep.subr.mxu0 0.0
    %646 = vmatpush1.msra.mxu0 0.0
    %647 = vmatprep.subr.mxu0 0.0
    %648 = vmatpush1.msra.mxu0 0.0
    %649 = vmatprep.subr.mxu0 0.0
    %650 = vmatpush1.msra.mxu0 0.0
    %651 = vmatprep.subr.mxu0 0.0
    %652 = vmatpush1.msra.mxu0 0.0
    %653 = vmatprep.subr.mxu0 0.0
    %654 = vmatpush1.msra.mxu0 0.0
    %655 = vmatprep.subr.mxu0 0.0
    %656 = vmatpush1.msra.mxu0 0.0
    %657 = vmatprep.subr.mxu0 0.0
    %658 = vmatpush1.msra.mxu0 0.0
    %659 = vmatprep.subr.mxu0 0.0
    %660 = vmatpush1.msra.mxu0 0.0
    %661 = vmatprep.subr.mxu0 0.0
    %662 = vmatpush1.msra.mxu0 0.0
    %663 = vmatprep.mubr.f32.mxu0 0.0
    %664 = vmatmul.mubr.f32.gmra.mrb[0].mxu0 %v597
    %v665 = vpop.f32.mrb[0].mxu0
    %v666 = vadd.f32 0.0, %v665
    %v667 = vpop.f32.mrb[0].mxu0
    %v668 = vadd.f32 0.0, %v667
    %669 = vdwg.mxu0
    %v670 = vadd.f32 %v668, %v384
    %v671 = vsub.f32 0.0, %v670
    %v672 = vmul.f32 %v671, 1.442695
    %v673 = vpow.pop %v672
    %v674 = vadd.f32 %v673, 1.0
    %v675 = vrcp.pop %v674
    %v676 = vmul.f32 1.0, %v675
    %v677 = vtanh.pop %v670
    %v678 = vmul.f32 %v676, %v549
    %680 = vrot.lane.b32.xlu0 %v677, 64
    %v681 = vpop.permute.xlu0 %680
    %v683 = vmul.f32 %v676, %v681
    %685 = vrot.lane.b32.xlu0 %v683, 32
    %v686 = vpop.permute.xlu0 %685
    %v688 = vadd.f32 %v678, %v686
    %v689 = vtanh.pop %v688
    %691 = vrot.lane.b32.xlu0 %v689, 64
    %v692 = vpop.permute.xlu0 %691
    %v694 = vmul.f32 %v676, %v692
    %696 = vrot.lane.b32.xlu0 %v694, 32
    %v697 = vpop.permute.xlu0 %696
    %699 = vst.msk [vmem:[#allocation2 + $0x4] sm:$0x3] %vm419, %v697
    %v700 = vrot.slane %v161, 6
    %v702 = vadd.f32 %v666, %v700
    %v703 = vsub.f32 0.0, %v702
    %v704 = vmul.f32 %v703, 1.442695
    %v705 = vpow.pop %v704
    %v706 = vadd.f32 %v705, 1.0
    %v707 = vrcp.pop %v706
    %v708 = vmul.f32 1.0, %v707
    %v709 = vtanh.pop %v702
    %v710 = vmul.f32 %v708, %v581
    %712 = vrot.lane.b32.xlu0 %v709, 64
    %v713 = vpop.permute.xlu0 %712
    %v715 = vmul.f32 %v708, %v713
    %717 = vrot.lane.b32.xlu0 %v715, 32
    %v718 = vpop.permute.xlu0 %717
    %v720 = vadd.f32 %v710, %v718
    %v721 = vtanh.pop %v720
    %723 = vrot.lane.b32.xlu0 %v721, 64
    %v724 = vpop.permute.xlu0 %723
    %v726 = vmul.f32 %v708, %v724
    %728 = vrot.lane.b32.xlu0 %v726, 32
    %v729 = vpop.permute.xlu0 %728
    %731 = vrot.lane.b32.xlu0 %v694, 64
    %v732 = vpop.permute.xlu0 %731
    %v734 = vsel %vm196, %v729, %v732
    %v736 = vsel %vm198, %v734, 0
    %738 = vmatprep.subr.mxu0 %v170
    %739 = vmatpush1.msra.mxu0 %v169
    %740 = vmatprep.subr.mxu0 %v172
    %741 = vmatpush1.msra.mxu0 %v171
    %742 = vmatprep.subr.mxu0 %v174
    %743 = vmatpush1.msra.mxu0 %v173
    %744 = vmatprep.subr.mxu0 %v176
    %745 = vmatpush1.msra.mxu0 %v175
    %746 = vmatprep.subr.mxu0 %v178
    %747 = vmatpush1.msra.mxu0 %v177
    %748 = vmatprep.subr.mxu0 %v180
    %749 = vmatpush1.msra.mxu0 %v179
    %750 = vmatprep.subr.mxu0 %v182
    %751 = vmatpush1.msra.mxu0 %v181
    %752 = vmatprep.subr.mxu0 %v184
    %753 = vmatpush1.msra.mxu0 %v183
    %754 = vmatprep.subr.mxu0 0.0
    %755 = vmatpush1.msra.mxu0 0.0
    %756 = vmatprep.subr.mxu0 0.0
    %757 = vmatpush1.msra.mxu0 0.0
    %758 = vmatprep.subr.mxu0 0.0
    %759 = vmatpush1.msra.mxu0 0.0
    %760 = vmatprep.subr.mxu0 0.0
    %761 = vmatpush1.msra.mxu0 0.0
    %762 = vmatprep.subr.mxu0 0.0
    %763 = vmatpush1.msra.mxu0 0.0
    %764 = vmatprep.subr.mxu0 0.0
    %765 = vmatpush1.msra.mxu0 0.0
    %766 = vmatprep.subr.mxu0 0.0
    %767 = vmatpush1.msra.mxu0 0.0
    %768 = vmatprep.subr.mxu0 0.0
    %769 = vmatpush1.msra.mxu0 0.0
    %770 = vmatprep.subr.mxu0 0.0
    %771 = vmatpush1.msra.mxu0 0.0
    %772 = vmatprep.subr.mxu0 0.0
    %773 = vmatpush1.msra.mxu0 0.0
    %774 = vmatprep.subr.mxu0 0.0
    %775 = vmatpush1.msra.mxu0 0.0
    %776 = vmatprep.subr.mxu0 0.0
    %777 = vmatpush1.msra.mxu0 0.0
    %778 = vmatprep.subr.mxu0 0.0
    %779 = vmatpush1.msra.mxu0 0.0
    %780 = vmatprep.subr.mxu0 0.0
    %781 = vmatpush1.msra.mxu0 0.0
    %782 = vmatprep.subr.mxu0 0.0
    %783 = vmatpush1.msra.mxu0 0.0
    %784 = vmatprep.subr.mxu0 0.0
    %785 = vmatpush1.msra.mxu0 0.0
    %786 = vmatprep.subr.mxu0 0.0
    %787 = vmatpush1.msra.mxu0 0.0
    %788 = vmatprep.subr.mxu0 0.0
    %789 = vmatpush1.msra.mxu0 0.0
    %790 = vmatprep.subr.mxu0 0.0
    %791 = vmatpush1.msra.mxu0 0.0
    %792 = vmatprep.subr.mxu0 0.0
    %793 = vmatpush1.msra.mxu0 0.0
    %794 = vmatprep.subr.mxu0 0.0
    %795 = vmatpush1.msra.mxu0 0.0
    %796 = vmatprep.subr.mxu0 0.0
    %797 = vmatpush1.msra.mxu0 0.0
    %798 = vmatprep.subr.mxu0 0.0
    %799 = vmatpush1.msra.mxu0 0.0
    %800 = vmatprep.subr.mxu0 0.0
    %801 = vmatpush1.msra.mxu0 0.0
    %802 = vmatprep.mubr.f32.mxu0 0.0
    %803 = vmatmul.mubr.f32.gmra.mrb[0].mxu0 %v736
    %v804 = vpop.f32.mrb[0].mxu0
    %v805 = vadd.f32 0.0, %v804
    %v806 = vpop.f32.mrb[0].mxu0
    %v807 = vadd.f32 0.0, %v806
    %808 = vdwg.mxu0
    %v809 = vadd.f32 %v807, %v384
    %v810 = vsub.f32 0.0, %v809
    %v811 = vmul.f32 %v810, 1.442695
    %v812 = vpow.pop %v811
    %v813 = vadd.f32 %v812, 1.0
    %v814 = vrcp.pop %v813
    %v815 = vmul.f32 1.0, %v814
    %v816 = vtanh.pop %v809
    %v817 = vmul.f32 %v815, %v688
    %819 = vrot.lane.b32.xlu0 %v816, 64
    %v820 = vpop.permute.xlu0 %819
    %v822 = vmul.f32 %v815, %v820
    %824 = vrot.lane.b32.xlu0 %v822, 32
    %v825 = vpop.permute.xlu0 %824
    %v827 = vadd.f32 %v817, %v825
    %v828 = vtanh.pop %v827
    %830 = vrot.lane.b32.xlu0 %v828, 64
    %v831 = vpop.permute.xlu0 %830
    %v833 = vmul.f32 %v815, %v831
    %835 = vrot.lane.b32.xlu0 %v833, 32
    %v836 = vpop.permute.xlu0 %835
    %838 = vst.msk [vmem:[#allocation2 + $0x6] sm:$0x3] %vm419, %v836
    %v839 = vadd.f32 %v805, %v166
    %v840 = vsub.f32 0.0, %v839
    %v841 = vmul.f32 %v840, 1.442695
    %v842 = vpow.pop %v841
    %v843 = vadd.f32 %v842, 1.0
    %v844 = vrcp.pop %v843
    %v845 = vmul.f32 1.0, %v844
    %v846 = vtanh.pop %v839
    %v847 = vmul.f32 %v845, %v720
    %849 = vrot.lane.b32.xlu0 %v846, 64
    %v850 = vpop.permute.xlu0 %849
    %v852 = vmul.f32 %v845, %v850
    %854 = vrot.lane.b32.xlu0 %v852, 32
    %v855 = vpop.permute.xlu0 %854
    %v857 = vadd.f32 %v847, %v855
    %v858 = vtanh.pop %v857
    %860 = vrot.lane.b32.xlu0 %v858, 64
    %v861 = vpop.permute.xlu0 %860
    %v863 = vmul.f32 %v845, %v861
    %865 = vrot.lane.b32.xlu0 %v863, 32
    %v866 = vpop.permute.xlu0 %865
    %868 = vrot.lane.b32.xlu0 %v833, 64
    %v869 = vpop.permute.xlu0 %868
    %v871 = vsel %vm196, %v866, %v869
    %v873 = vsel %vm198, %v871, 0
    %875 = vmatprep.subr.mxu0 %v170
    %876 = vmatpush1.msra.mxu0 %v169
    %877 = vmatprep.subr.mxu0 %v172
    %878 = vmatpush1.msra.mxu0 %v171
    %879 = vmatprep.subr.mxu0 %v174
    %880 = vmatpush1.msra.mxu0 %v173
    %881 = vmatprep.subr.mxu0 %v176
    %882 = vmatpush1.msra.mxu0 %v175
    %883 = vmatprep.subr.mxu0 %v178
    %884 = vmatpush1.msra.mxu0 %v177
    %885 = vmatprep.subr.mxu0 %v180
    %886 = vmatpush1.msra.mxu0 %v179
    %887 = vmatprep.subr.mxu0 %v182
    %888 = vmatpush1.msra.mxu0 %v181
    %889 = vmatprep.subr.mxu0 %v184
    %890 = vmatpush1.msra.mxu0 %v183
    %891 = vmatprep.subr.mxu0 0.0
    %892 = vmatpush1.msra.mxu0 0.0
    %893 = vmatprep.subr.mxu0 0.0
    %894 = vmatpush1.msra.mxu0 0.0
    %895 = vmatprep.subr.mxu0 0.0
    %896 = vmatpush1.msra.mxu0 0.0
    %897 = vmatprep.subr.mxu0 0.0
    %898 = vmatpush1.msra.mxu0 0.0
    %899 = vmatprep.subr.mxu0 0.0
    %900 = vmatpush1.msra.mxu0 0.0
    %901 = vmatprep.subr.mxu0 0.0
    %902 = vmatpush1.msra.mxu0 0.0
    %903 = vmatprep.subr.mxu0 0.0
    %904 = vmatpush1.msra.mxu0 0.0
    %905 = vmatprep.subr.mxu0 0.0
    %906 = vmatpush1.msra.mxu0 0.0
    %907 = vmatprep.subr.mxu0 0.0
    %908 = vmatpush1.msra.mxu0 0.0
    %909 = vmatprep.subr.mxu0 0.0
    %910 = vmatpush1.msra.mxu0 0.0
    %911 = vmatprep.subr.mxu0 0.0
    %912 = vmatpush1.msra.mxu0 0.0
    %913 = vmatprep.subr.mxu0 0.0
    %914 = vmatpush1.msra.mxu0 0.0
    %915 = vmatprep.subr.mxu0 0.0
    %916 = vmatpush1.msra.mxu0 0.0
    %917 = vmatprep.subr.mxu0 0.0
    %918 = vmatpush1.msra.mxu0 0.0
    %919 = vmatprep.subr.mxu0 0.0
    %920 = vmatpush1.msra.mxu0 0.0
    %921 = vmatprep.subr.mxu0 0.0
    %922 = vmatpush1.msra.mxu0 0.0
    %923 = vmatprep.subr.mxu0 0.0
    %924 = vmatpush1.msra.mxu0 0.0
    %925 = vmatprep.subr.mxu0 0.0
    %926 = vmatpush1.msra.mxu0 0.0
    %927 = vmatprep.subr.mxu0 0.0
    %928 = vmatpush1.msra.mxu0 0.0
    %929 = vmatprep.subr.mxu0 0.0
    %930 = vmatpush1.msra.mxu0 0.0
    %931 = vmatprep.subr.mxu0 0.0
    %932 = vmatpush1.msra.mxu0 0.0
    %933 = vmatprep.subr.mxu0 0.0
    %934 = vmatpush1.msra.mxu0 0.0
    %935 = vmatprep.subr.mxu0 0.0
    %936 = vmatpush1.msra.mxu0 0.0
    %937 = vmatprep.subr.mxu0 0.0
    %938 = vmatpush1.msra.mxu0 0.0
    %939 = vmatprep.mubr.f32.mxu0 0.0
    %940 = vmatmul.mubr.f32.gmra.mrb[0].mxu0 %v873
    %v941 = vpop.f32.mrb[0].mxu0
    %v942 = vadd.f32 0.0, %v941
    %v943 = vpop.f32.mrb[0].mxu0
    %v944 = vadd.f32 0.0, %v943
    %945 = vdwg.mxu0
    %v946 = vadd.f32 %v944, %v384
    %v947 = vsub.f32 0.0, %v946
    %v948 = vmul.f32 %v947, 1.442695
    %v949 = vpow.pop %v948
    %v950 = vadd.f32 %v949, 1.0
    %v951 = vrcp.pop %v950
    %v952 = vmul.f32 1.0, %v951
    %v953 = vtanh.pop %v946
    %v954 = vmul.f32 %v952, %v827
    %956 = vrot.lane.b32.xlu0 %v953, 64
    %v957 = vpop.permute.xlu0 %956
    %v959 = vmul.f32 %v952, %v957
    %961 = vrot.lane.b32.xlu0 %v959, 32
    %v962 = vpop.permute.xlu0 %961
    %v964 = vadd.f32 %v954, %v962
    %v965 = vtanh.pop %v964
    %967 = vrot.lane.b32.xlu0 %v965, 64
    %v968 = vpop.permute.xlu0 %967
    %v970 = vmul.f32 %v952, %v968
    %972 = vrot.lane.b32.xlu0 %v970, 32
    %v973 = vpop.permute.xlu0 %972
    %975 = vst.msk [vmem:[#allocation2 + $0x8] sm:$0x3] %vm419, %v973
    %v977 = vrot.slane %v166, 2
    %v979 = vadd.f32 %v942, %v977
    %v980 = vsub.f32 0.0, %v979
    %v981 = vmul.f32 %v980, 1.442695
    %v982 = vpow.pop %v981
    %v983 = vadd.f32 %v982, 1.0
    %v984 = vrcp.pop %v983
    %v985 = vmul.f32 1.0, %v984
    %v986 = vtanh.pop %v979
    %v987 = vmul.f32 %v985, %v857
    %989 = vrot.lane.b32.xlu0 %v986, 64
    %v990 = vpop.permute.xlu0 %989
    %v992 = vmul.f32 %v985, %v990
    %994 = vrot.lane.b32.xlu0 %v992, 32
    %v995 = vpop.permute.xlu0 %994
    %v997 = vadd.f32 %v987, %v995
    %v998 = vtanh.pop %v997
    %1000 = vrot.lane.b32.xlu0 %v998, 64
    %v1001 = vpop.permute.xlu0 %1000
    %v1003 = vmul.f32 %v985, %v1001
    %1005 = vrot.lane.b32.xlu0 %v1003, 32
    %v1006 = vpop.permute.xlu0 %1005
    %1008 = vrot.lane.b32.xlu0 %v970, 64
    %v1009 = vpop.permute.xlu0 %1008
    %v1011 = vsel %vm196, %v1006, %v1009
    %v1013 = vsel %vm198, %v1011, 0
    %1015 = vmatprep.subr.mxu0 %v170
    %1016 = vmatpush1.msra.mxu0 %v169
    %1017 = vmatprep.subr.mxu0 %v172
    %1018 = vmatpush1.msra.mxu0 %v171
    %1019 = vmatprep.subr.mxu0 %v174
    %1020 = vmatpush1.msra.mxu0 %v173
    %1021 = vmatprep.subr.mxu0 %v176
    %1022 = vmatpush1.msra.mxu0 %v175
    %1023 = vmatprep.subr.mxu0 %v178
    %1024 = vmatpush1.msra.mxu0 %v177
    %1025 = vmatprep.subr.mxu0 %v180
    %1026 = vmatpush1.msra.mxu0 %v179
    %1027 = vmatprep.subr.mxu0 %v182
    %1028 = vmatpush1.msra.mxu0 %v181
    %1029 = vmatprep.subr.mxu0 %v184
    %1030 = vmatpush1.msra.mxu0 %v183
    %1031 = vmatprep.subr.mxu0 0.0
    %1032 = vmatpush1.msra.mxu0 0.0
    %1033 = vmatprep.subr.mxu0 0.0
    %1034 = vmatpush1.msra.mxu0 0.0
    %1035 = vmatprep.subr.mxu0 0.0
    %1036 = vmatpush1.msra.mxu0 0.0
    %1037 = vmatprep.subr.mxu0 0.0
    %1038 = vmatpush1.msra.mxu0 0.0
    %1039 = vmatprep.subr.mxu0 0.0
    %1040 = vmatpush1.msra.mxu0 0.0
    %1041 = vmatprep.subr.mxu0 0.0
    %1042 = vmatpush1.msra.mxu0 0.0
    %1043 = vmatprep.subr.mxu0 0.0
    %1044 = vmatpush1.msra.mxu0 0.0
    %1045 = vmatprep.subr.mxu0 0.0
    %1046 = vmatpush1.msra.mxu0 0.0
    %1047 = vmatprep.subr.mxu0 0.0
    %1048 = vmatpush1.msra.mxu0 0.0
    %1049 = vmatprep.subr.mxu0 0.0
    %1050 = vmatpush1.msra.mxu0 0.0
    %1051 = vmatprep.subr.mxu0 0.0
    %1052 = vmatpush1.msra.mxu0 0.0
    %1053 = vmatprep.subr.mxu0 0.0
    %1054 = vmatpush1.msra.mxu0 0.0
    %1055 = vmatprep.subr.mxu0 0.0
    %1056 = vmatpush1.msra.mxu0 0.0
    %1057 = vmatprep.subr.mxu0 0.0
    %1058 = vmatpush1.msra.mxu0 0.0
    %1059 = vmatprep.subr.mxu0 0.0
    %1060 = vmatpush1.msra.mxu0 0.0
    %1061 = vmatprep.subr.mxu0 0.0
    %1062 = vmatpush1.msra.mxu0 0.0
    %1063 = vmatprep.subr.mxu0 0.0
    %1064 = vmatpush1.msra.mxu0 0.0
    %1065 = vmatprep.subr.mxu0 0.0
    %1066 = vmatpush1.msra.mxu0 0.0
    %1067 = vmatprep.subr.mxu0 0.0
    %1068 = vmatpush1.msra.mxu0 0.0
    %1069 = vmatprep.subr.mxu0 0.0
    %1070 = vmatpush1.msra.mxu0 0.0
    %1071 = vmatprep.subr.mxu0 0.0
    %1072 = vmatpush1.msra.mxu0 0.0
    %1073 = vmatprep.subr.mxu0 0.0
    %1074 = vmatpush1.msra.mxu0 0.0
    %1075 = vmatprep.subr.mxu0 0.0
    %1076 = vmatpush1.msra.mxu0 0.0
    %1077 = vmatprep.subr.mxu0 0.0
    %1078 = vmatpush1.msra.mxu0 0.0
    %1079 = vmatprep.mubr.f32.mxu0 0.0
    %1080 = vmatmul.mubr.f32.gmra.mrb[0].mxu0 %v1013
    %v1081 = vpop.f32.mrb[0].mxu0
    %v1082 = vadd.f32 0.0, %v1081
    %v1083 = vpop.f32.mrb[0].mxu0
    %v1084 = vadd.f32 0.0, %v1083
    %1085 = vdwg.mxu0
    %v1086 = vadd.f32 %v1084, %v384
    %v1087 = vsub.f32 0.0, %v1086
    %v1088 = vmul.f32 %v1087, 1.442695
    %v1089 = vpow.pop %v1088
    %v1090 = vadd.f32 %v1089, 1.0
    %v1091 = vrcp.pop %v1090
    %v1092 = vmul.f32 1.0, %v1091
    %v1093 = vtanh.pop %v1086
    %v1094 = vmul.f32 %v1092, %v964
    %1096 = vrot.lane.b32.xlu0 %v1093, 64
    %v1097 = vpop.permute.xlu0 %1096
    %v1099 = vmul.f32 %v1092, %v1097
    %1101 = vrot.lane.b32.xlu0 %v1099, 32
    %v1102 = vpop.permute.xlu0 %1101
    %v1104 = vadd.f32 %v1094, %v1102
    %v1105 = vtanh.pop %v1104
    %1107 = vrot.lane.b32.xlu0 %v1105, 64
    %v1108 = vpop.permute.xlu0 %1107
    %v1110 = vmul.f32 %v1092, %v1108
    %1112 = vrot.lane.b32.xlu0 %v1110, 32
    %v1113 = vpop.permute.xlu0 %1112
    %1115 = vst.msk [vmem:[#allocation2 + $0xa] sm:$0x3] %vm419, %v1113
    %v1116 = vrot.slane %v166, 4
    %v1118 = vadd.f32 %v1082, %v1116
    %v1119 = vsub.f32 0.0, %v1118
    %v1120 = vmul.f32 %v1119, 1.442695
    %v1121 = vpow.pop %v1120
    %v1122 = vadd.f32 %v1121, 1.0
    %v1123 = vrcp.pop %v1122
    %v1124 = vmul.f32 1.0, %v1123
    %v1125 = vtanh.pop %v1118
    %v1126 = vmul.f32 %v1124, %v997
    %1128 = vrot.lane.b32.xlu0 %v1125, 64
    %v1129 = vpop.permute.xlu0 %1128
    %v1131 = vmul.f32 %v1124, %v1129
    %1133 = vrot.lane.b32.xlu0 %v1131, 32
    %v1134 = vpop.permute.xlu0 %1133
    %v1136 = vadd.f32 %v1126, %v1134
    %v1137 = vtanh.pop %v1136
    %1139 = vrot.lane.b32.xlu0 %v1137, 64
    %v1140 = vpop.permute.xlu0 %1139
    %v1142 = vmul.f32 %v1124, %v1140
    %1144 = vrot.lane.b32.xlu0 %v1142, 32
    %v1145 = vpop.permute.xlu0 %1144
    %1147 = vrot.lane.b32.xlu0 %v1110, 64
    %v1148 = vpop.permute.xlu0 %1147
    %v1150 = vsel %vm196, %v1145, %v1148
    %v1152 = vsel %vm198, %v1150, 0
    %1154 = vmatprep.subr.mxu0 %v170
    %1155 = vmatpush1.msra.mxu0 %v169
    %1156 = vmatprep.subr.mxu0 %v172
    %1157 = vmatpush1.msra.mxu0 %v171
    %1158 = vmatprep.subr.mxu0 %v174
    %1159 = vmatpush1.msra.mxu0 %v173
    %1160 = vmatprep.subr.mxu0 %v176
    %1161 = vmatpush1.msra.mxu0 %v175
    %1162 = vmatprep.subr.mxu0 %v178
    %1163 = vmatpush1.msra.mxu0 %v177
    %1164 = vmatprep.subr.mxu0 %v180
    %1165 = vmatpush1.msra.mxu0 %v179
    %1166 = vmatprep.subr.mxu0 %v182
    %1167 = vmatpush1.msra.mxu0 %v181
    %1168 = vmatprep.subr.mxu0 %v184
    %1169 = vmatpush1.msra.mxu0 %v183
    %1170 = vmatprep.subr.mxu0 0.0
    %1171 = vmatpush1.msra.mxu0 0.0
    %1172 = vmatprep.subr.mxu0 0.0
    %1173 = vmatpush1.msra.mxu0 0.0
    %1174 = vmatprep.subr.mxu0 0.0
    %1175 = vmatpush1.msra.mxu0 0.0
    %1176 = vmatprep.subr.mxu0 0.0
    %1177 = vmatpush1.msra.mxu0 0.0
    %1178 = vmatprep.subr.mxu0 0.0
    %1179 = vmatpush1.msra.mxu0 0.0
    %1180 = vmatprep.subr.mxu0 0.0
    %1181 = vmatpush1.msra.mxu0 0.0
    %1182 = vmatprep.subr.mxu0 0.0
    %1183 = vmatpush1.msra.mxu0 0.0
    %1184 = vmatprep.subr.mxu0 0.0
    %1185 = vmatpush1.msra.mxu0 0.0
    %1186 = vmatprep.subr.mxu0 0.0
    %1187 = vmatpush1.msra.mxu0 0.0
    %1188 = vmatprep.subr.mxu0 0.0
    %1189 = vmatpush1.msra.mxu0 0.0
    %1190 = vmatprep.subr.mxu0 0.0
    %1191 = vmatpush1.msra.mxu0 0.0
    %1192 = vmatprep.subr.mxu0 0.0
    %1193 = vmatpush1.msra.mxu0 0.0
    %1194 = vmatprep.subr.mxu0 0.0
    %1195 = vmatpush1.msra.mxu0 0.0
    %1196 = vmatprep.subr.mxu0 0.0
    %1197 = vmatpush1.msra.mxu0 0.0
    %1198 = vmatprep.subr.mxu0 0.0
    %1199 = vmatpush1.msra.mxu0 0.0
    %1200 = vmatprep.subr.mxu0 0.0
    %1201 = vmatpush1.msra.mxu0 0.0
    %1202 = vmatprep.subr.mxu0 0.0
    %1203 = vmatpush1.msra.mxu0 0.0
    %1204 = vmatprep.subr.mxu0 0.0
    %1205 = vmatpush1.msra.mxu0 0.0
    %1206 = vmatprep.subr.mxu0 0.0
    %1207 = vmatpush1.msra.mxu0 0.0
    %1208 = vmatprep.subr.mxu0 0.0
    %1209 = vmatpush1.msra.mxu0 0.0
    %1210 = vmatprep.subr.mxu0 0.0
    %1211 = vmatpush1.msra.mxu0 0.0
    %1212 = vmatprep.subr.mxu0 0.0
    %1213 = vmatpush1.msra.mxu0 0.0
    %1214 = vmatprep.subr.mxu0 0.0
    %1215 = vmatpush1.msra.mxu0 0.0
    %1216 = vmatprep.subr.mxu0 0.0
    %1217 = vmatpush1.msra.mxu0 0.0
    %1218 = vmatprep.mubr.f32.mxu0 0.0
    %1219 = vmatmul.mubr.f32.gmra.mrb[0].mxu0 %v1152
    %v1220 = vpop.f32.mrb[0].mxu0
    %v1221 = vadd.f32 0.0, %v1220
    %v1222 = vpop.f32.mrb[0].mxu0
    %v1223 = vadd.f32 0.0, %v1222
    %1224 = vdwg.mxu0
    %v1225 = vadd.f32 %v1223, %v384
    %v1226 = vsub.f32 0.0, %v1225
    %v1227 = vmul.f32 %v1226, 1.442695
    %v1228 = vpow.pop %v1227
    %v1229 = vadd.f32 %v1228, 1.0
    %v1230 = vrcp.pop %v1229
    %v1231 = vmul.f32 1.0, %v1230
    %v1232 = vtanh.pop %v1225
    %v1233 = vmul.f32 %v1231, %v1104
    %1235 = vrot.lane.b32.xlu0 %v1232, 64
    %v1236 = vpop.permute.xlu0 %1235
    %v1238 = vmul.f32 %v1231, %v1236
    %1240 = vrot.lane.b32.xlu0 %v1238, 32
    %v1241 = vpop.permute.xlu0 %1240
    %v1243 = vadd.f32 %v1233, %v1241
    %v1244 = vtanh.pop %v1243
    %1246 = vrot.lane.b32.xlu0 %v1244, 64
    %v1247 = vpop.permute.xlu0 %1246
    %v1249 = vmul.f32 %v1231, %v1247
    %1251 = vrot.lane.b32.xlu0 %v1249, 32
    %v1252 = vpop.permute.xlu0 %1251
    %1254 = vst.msk [vmem:[#allocation2 + $0xc] sm:$0x3] %vm419, %v1252
    %v1255 = vrot.slane %v166, 6
    %v1257 = vadd.f32 %v1221, %v1255
    %v1258 = vsub.f32 0.0, %v1257
    %v1259 = vmul.f32 %v1258, 1.442695
    %v1260 = vpow.pop %v1259
    %v1261 = vadd.f32 %v1260, 1.0
    %v1262 = vrcp.pop %v1261
    %v1263 = vmul.f32 1.0, %v1262
    %v1264 = vtanh.pop %v1257
    %v1265 = vmul.f32 %v1263, %v1136
    %1267 = vrot.lane.b32.xlu0 %v1264, 64
    %v1268 = vpop.permute.xlu0 %1267
    %v1270 = vmul.f32 %v1263, %v1268
    %1272 = vrot.lane.b32.xlu0 %v1270, 32
    %v1273 = vpop.permute.xlu0 %1272
    %v1275 = vadd.f32 %v1265, %v1273
    %v1276 = vtanh.pop %v1275
    %1278 = vrot.lane.b32.xlu0 %v1276, 64
    %v1279 = vpop.permute.xlu0 %1278
    %v1281 = vmul.f32 %v1263, %v1279
    %1283 = vrot.lane.b32.xlu0 %v1281, 32
    %v1284 = vpop.permute.xlu0 %1283
    %1286 = vrot.lane.b32.xlu0 %v1249, 64
    %v1287 = vpop.permute.xlu0 %1286
    %v1289 = vsel %vm196, %v1284, %v1287
    %v1291 = vsel %vm198, %v1289, 0
    %1293 = vmatprep.subr.mxu0 %v170
    %1294 = vmatpush1.msra.mxu0 %v169
    %1295 = vmatprep.subr.mxu0 %v172
    %1296 = vmatpush1.msra.mxu0 %v171
    %1297 = vmatprep.subr.mxu0 %v174
    %1298 = vmatpush1.msra.mxu0 %v173
    %1299 = vmatprep.subr.mxu0 %v176
    %1300 = vmatpush1.msra.mxu0 %v175
    %1301 = vmatprep.subr.mxu0 %v178
    %1302 = vmatpush1.msra.mxu0 %v177
    %1303 = vmatprep.subr.mxu0 %v180
    %1304 = vmatpush1.msra.mxu0 %v179
    %1305 = vmatprep.subr.mxu0 %v182
    %1306 = vmatpush1.msra.mxu0 %v181
    %1307 = vmatprep.subr.mxu0 %v184
    %1308 = vmatpush1.msra.mxu0 %v183
    %1309 = vmatprep.subr.mxu0 0.0
    %1310 = vmatpush1.msra.mxu0 0.0
    %1311 = vmatprep.subr.mxu0 0.0
    %1312 = vmatpush1.msra.mxu0 0.0
    %1313 = vmatprep.subr.mxu0 0.0
    %1314 = vmatpush1.msra.mxu0 0.0
    %1315 = vmatprep.subr.mxu0 0.0
    %1316 = vmatpush1.msra.mxu0 0.0
    %1317 = vmatprep.subr.mxu0 0.0
    %1318 = vmatpush1.msra.mxu0 0.0
    %1319 = vmatprep.subr.mxu0 0.0
    %1320 = vmatpush1.msra.mxu0 0.0
    %1321 = vmatprep.subr.mxu0 0.0
    %1322 = vmatpush1.msra.mxu0 0.0
    %1323 = vmatprep.subr.mxu0 0.0
    %1324 = vmatpush1.msra.mxu0 0.0
    %1325 = vmatprep.subr.mxu0 0.0
    %1326 = vmatpush1.msra.mxu0 0.0
    %1327 = vmatprep.subr.mxu0 0.0
    %1328 = vmatpush1.msra.mxu0 0.0
    %1329 = vmatprep.subr.mxu0 0.0
    %1330 = vmatpush1.msra.mxu0 0.0
    %1331 = vmatprep.subr.mxu0 0.0
    %1332 = vmatpush1.msra.mxu0 0.0
    %1333 = vmatprep.subr.mxu0 0.0
    %1334 = vmatpush1.msra.mxu0 0.0
    %1335 = vmatprep.subr.mxu0 0.0
    %1336 = vmatpush1.msra.mxu0 0.0
    %1337 = vmatprep.subr.mxu0 0.0
    %1338 = vmatpush1.msra.mxu0 0.0
    %1339 = vmatprep.subr.mxu0 0.0
    %1340 = vmatpush1.msra.mxu0 0.0
    %1341 = vmatprep.subr.mxu0 0.0
    %1342 = vmatpush1.msra.mxu0 0.0
    %1343 = vmatprep.subr.mxu0 0.0
    %1344 = vmatpush1.msra.mxu0 0.0
    %1345 = vmatprep.subr.mxu0 0.0
    %1346 = vmatpush1.msra.mxu0 0.0
    %1347 = vmatprep.subr.mxu0 0.0
    %1348 = vmatpush1.msra.mxu0 0.0
    %1349 = vmatprep.subr.mxu0 0.0
    %1350 = vmatpush1.msra.mxu0 0.0
    %1351 = vmatprep.subr.mxu0 0.0
    %1352 = vmatpush1.msra.mxu0 0.0
    %1353 = vmatprep.subr.mxu0 0.0
    %1354 = vmatpush1.msra.mxu0 0.0
    %1355 = vmatprep.subr.mxu0 0.0
    %1356 = vmatpush1.msra.mxu0 0.0
    %1357 = vmatprep.mubr.f32.mxu0 0.0
    %1358 = vmatmul.mubr.f32.gmra.mrb[0].mxu0 %v1291
    %v1359 = vpop.f32.mrb[0].mxu0
    %v1360 = vpop.f32.mrb[0].mxu0
    %v1361 = vadd.f32 0.0, %v1360
    %1362 = vdwg.mxu0
    %v1363 = vadd.f32 %v1361, %v384
    %v1364 = vsub.f32 0.0, %v1363
    %v1365 = vmul.f32 %v1364, 1.442695
    %v1366 = vpow.pop %v1365
    %v1367 = vadd.f32 %v1366, 1.0
    %v1368 = vrcp.pop %v1367
    %v1369 = vmul.f32 1.0, %v1368
    %v1370 = vtanh.pop %v1363
    %v1371 = vmul.f32 %v1369, %v1243
    %1373 = vrot.lane.b32.xlu0 %v1370, 64
    %v1374 = vpop.permute.xlu0 %1373
    %v1376 = vmul.f32 %v1369, %v1374
    %1378 = vrot.lane.b32.xlu0 %v1376, 32
    %v1379 = vpop.permute.xlu0 %1378
    %v1381 = vadd.f32 %v1371, %v1379
    %v1382 = vtanh.pop %v1381
    %1384 = vrot.lane.b32.xlu0 %v1382, 64
    %v1385 = vpop.permute.xlu0 %1384
    %v1387 = vmul.f32 %v1369, %v1385
    %1389 = vrot.lane.b32.xlu0 %v1387, 32
    %v1390 = vpop.permute.xlu0 %1389
    %1392 = vst.msk [vmem:[#allocation2 + $0xe] sm:$0x3] %vm419, %v1390
    %v1393 = vld [vmem:[#allocation2] sm:$0xff]
    %v1394 = vld [vmem:[#allocation2 + $0x8] sm:$0xff]
    %v1395 = vld [vmem:[%s4] sm:$0xff]
    %v1396 = vld [vmem:[%s4 + $0x8] sm:$0xff]
    %v1397 = vld [vmem:[%s4 + $0x10] sm:$0xff]
    %v1398 = vld [vmem:[%s4 + $0x18] sm:$0xff]
    %v1399 = vld [vmem:[%s5] sm:$0x1]
    %v1401 = vlaneseq
    %v1402 = vshrl.u32 %v1401, 7
    %v1403 = vsub.s32 0, %v1402
    %v1404 = vrot.slane %v1399, %v1403
    %v1407 = vsel %vm196, %v1393, 0
    %v1410 = vsel %vm196, %v1394, 0
    %1412 = vmatprep.subr.mxu0 0.0
    %1413 = vmatpush1.msra.mxu0 %v1395
    %1414 = vmatprep.subr.mxu0 0.0
    %1415 = vmatpush1.msra.mxu0 %v1396
    %1416 = vmatprep.subr.mxu0 0.0
    %1417 = vmatpush1.msra.mxu0 %v1397
    %1418 = vmatprep.subr.mxu0 0.0
    %1419 = vmatpush1.msra.mxu0 %v1398
    %1420 = vmatprep.subr.mxu0 0.0
    %1421 = vmatpush1.msra.mxu0 0.0
    %1422 = vmatprep.subr.mxu0 0.0
    %1423 = vmatpush1.msra.mxu0 0.0
    %1424 = vmatprep.subr.mxu0 0.0
    %1425 = vmatpush1.msra.mxu0 0.0
    %1426 = vmatprep.subr.mxu0 0.0
    %1427 = vmatpush1.msra.mxu0 0.0
    %1428 = vmatprep.subr.mxu0 0.0
    %1429 = vmatpush1.msra.mxu0 0.0
    %1430 = vmatprep.subr.mxu0 0.0
    %1431 = vmatpush1.msra.mxu0 0.0
    %1432 = vmatprep.subr.mxu0 0.0
    %1433 = vmatpush1.msra.mxu0 0.0
    %1434 = vmatprep.subr.mxu0 0.0
    %1435 = vmatpush1.msra.mxu0 0.0
    %1436 = vmatprep.subr.mxu0 0.0
    %1437 = vmatpush1.msra.mxu0 0.0
    %1438 = vmatprep.subr.mxu0 0.0
    %1439 = vmatpush1.msra.mxu0 0.0
    %1440 = vmatprep.subr.mxu0 0.0
    %1441 = vmatpush1.msra.mxu0 0.0
    %1442 = vmatprep.subr.mxu0 0.0
    %1443 = vmatpush1.msra.mxu0 0.0
    %1444 = vmatprep.subr.mxu0 0.0
    %1445 = vmatpush1.msra.mxu0 0.0
    %1446 = vmatprep.subr.mxu0 0.0
    %1447 = vmatpush1.msra.mxu0 0.0
    %1448 = vmatprep.subr.mxu0 0.0
    %1449 = vmatpush1.msra.mxu0 0.0
    %1450 = vmatprep.subr.mxu0 0.0
    %1451 = vmatpush1.msra.mxu0 0.0
    %1452 = vmatprep.subr.mxu0 0.0
    %1453 = vmatpush1.msra.mxu0 0.0
    %1454 = vmatprep.subr.mxu0 0.0
    %1455 = vmatpush1.msra.mxu0 0.0
    %1456 = vmatprep.subr.mxu0 0.0
    %1457 = vmatpush1.msra.mxu0 0.0
    %1458 = vmatprep.subr.mxu0 0.0
    %1459 = vmatpush1.msra.mxu0 0.0
    %1460 = vmatprep.subr.mxu0 0.0
    %1461 = vmatpush1.msra.mxu0 0.0
    %1462 = vmatprep.subr.mxu0 0.0
    %1463 = vmatpush1.msra.mxu0 0.0
    %1464 = vmatprep.subr.mxu0 0.0
    %1465 = vmatpush1.msra.mxu0 0.0
    %1466 = vmatprep.subr.mxu0 0.0
    %1467 = vmatpush1.msra.mxu0 0.0
    %1468 = vmatprep.subr.mxu0 0.0
    %1469 = vmatpush1.msra.mxu0 0.0
    %1470 = vmatprep.subr.mxu0 0.0
    %1471 = vmatpush1.msra.mxu0 0.0
    %1472 = vmatprep.subr.mxu0 0.0
    %1473 = vmatpush1.msra.mxu0 0.0
    %1474 = vmatprep.subr.mxu0 0.0
    %1475 = vmatpush1.msra.mxu0 0.0
    %1476 = vmatprep.mubr.f32.mxu0 0.0
    %1477 = vmatmul.mubr.f32.gmra.mrb[0].mxu0 %v1407
    %v1478 = vpop.f32.mrb[0].mxu0
    %v1479 = vadd.f32 %v1404, %v1478
    %v1480 = vpop.f32.mrb[0].mxu0
    %1481 = vmatprep.mubr.f32.mxu0 0.0
    %1482 = vmatmul.mubr.f32.gmra.mrb[0].mxu0 %v1410
    %v1483 = vpop.f32.mrb[0].mxu0
    %v1484 = vadd.f32 %v1404, %v1483
    %v1485 = vpop.f32.mrb[0].mxu0
    %1486 = vdwg.mxu0
    %vm1487 = vcmp.lt.s32.totalorder %v65, 40
    %v1488 = vsel %vm1487, %v1479, -3.4028235e+38
    %v1489 = vsel %vm1487, %v1484, -3.4028235e+38
    %1490 = vmax.xlane.f32.xlu0 %v1488
    %v1491 = vpop.xlane.xlu0 %1490
    %1492 = vmax.xlane.f32.xlu0 %v1489
    %v1493 = vpop.xlane.xlu0 %1492
    %v1494 = vsub.f32 %v1488, %v1491
    %v1495 = vsub.f32 %v1489, %v1493
    %v1496 = vmul.f32 %v1494, 1.442695
    %v1497 = vpow.pop %v1496
    %v1498 = vmul.f32 %v1495, 1.442695
    %v1499 = vpow.pop %v1498
    %1500 = vadd.xlane.f32.xlu0 %v1497
    %v1501 = vpop.xlane.xlu0 %1500
    %1502 = vadd.xlane.f32.xlu0 %v1499
    %v1503 = vpop.xlane.xlu0 %1502
    %v1504 = vrcp.pop %v1501
    %v1505 = vmul.f32 %v1497, %v1504
    %v1506 = vrcp.pop %v1503
    %v1507 = vmul.f32 %v1499, %v1506
    %1508 = vst [vmem:[#allocation8] sm:$0xff] %v1505
    %1509 = vst [vmem:[#allocation8 + $0x8] sm:$0xff] %v1507
    %1510 = vst.msk [vmem:[#allocation9] sm:$0x3] %vm419, %v1284
    %s1511 = scalar_lea.vmem [#allocation9], 2
    %1512 = vst.msk [vmem:[%s1511] sm:$0x3] %vm419, %v1390
    %1514 = vrot.lane.b32.xlu0 %v1275, 96
    %v1515 = vpop.permute.xlu0 %1514
    %1517 = vst.msk [vmem:[#allocation11] sm:$0x3] %vm419, %v1515
    %1519 = vrot.lane.b32.xlu0 %v1381, 96
    %v1520 = vpop.permute.xlu0 %1519
    %s1522 = scalar_lea.vmem [#allocation11], 2
    %1523 = vst.msk [vmem:[%s1522] sm:$0x3] %vm419, %v1520
    // Predicated region
    $region42: #{forward.1} parent=1 // pred_check
      _
    $region43: #{forward.1} parent=1 // pred_check_branch
      %1525 = sbr.rel (0) target = $region45
    $region44: #{forward.1} parent=1 // pred_region
      %s1527 = ssub.s32 256, 256
      %1528 = vsyncadd [#allocation5], %s1527
      %s1529 = sshll.u32 [#allocation8], 4
      %s1530 = int_to_ptr.vmem [resolvable:$true] %s1529
      %1535 = dma.vmem_to_hbm [thread:$0]  %s1530, 256, %s8, [#allocation5], 128, 128, 8
    $region45: #{forward.1} parent=1 // pred_fallthru
      _
    // Predicated region
    $region46: #{forward.1} parent=1 // pred_check
      _
    $region47: #{forward.1} parent=1 // pred_check_branch
      %1537 = sbr.rel (0) target = $region49
    $region48: #{forward.1} parent=1 // pred_region
      %s1539 = ssub.s32 64, 64
      %1540 = vsyncadd [#allocation10], %s1539
      %s1541 = sshll.u32 [#allocation9], 4
      %s1542 = int_to_ptr.vmem [resolvable:$true] %s1541
      %1547 = dma.vmem_to_hbm [thread:$0]  %s1542, 64, %s9, [#allocation10], 32, 32, 2
    $region49: #{forward.1} parent=1 // pred_fallthru
      _
    // Predicated region
    $region50: #{forward.1} parent=1 // pred_check
      _
    $region51: #{forward.1} parent=1 // pred_check_branch
      %1549 = sbr.rel (0) target = $region53
    $region52: #{forward.1} parent=1 // pred_region
      %s1551 = ssub.s32 64, 64
      %1552 = vsyncadd [#allocation10], %s1551
      %s1553 = sshll.u32 [#allocation11], 4
      %s1554 = int_to_ptr.vmem [resolvable:$true] %s1553
      %1559 = dma.vmem_to_hbm [thread:$0]  %s1554, 64, %s10, [#allocation10], 32, 32, 2
    $region53: #{forward.1} parent=1 // pred_fallthru
      _
    // Predicated region
    $region54: #{forward.1} parent=1 // pred_check
      _
    $region55: #{forward.1} parent=1 // pred_check_branch
      %1561 = sbr.rel (0) target = $region57
    $region56: #{forward.1} parent=1 // pred_region
      %1562 = dma.done [#allocation5], 256
    $region57: #{forward.1} parent=1 // pred_fallthru
      _
    // Predicated region
    $region58: #{forward.1} parent=1 // pred_check
      _
    $region59: #{forward.1} parent=1 // pred_check_branch
      %1564 = sbr.rel (0) target = $region61
    $region60: #{forward.1} parent=1 // pred_region
      %1565 = dma.done [#allocation10], 64
    $region61: #{forward.1} parent=1 // pred_fallthru
      _
    // Predicated region
    $region62: #{forward.1} parent=1 // pred_check
      _
    $region63: #{forward.1} parent=1 // pred_check_branch
      %1567 = sbr.rel (0) target = $region65
    $region64: #{forward.1} parent=1 // pred_region
      %1568 = dma.done [#allocation10], 64
    $region65: #{forward.1} parent=1 // pred_fallthru
      _
    %1569 = vsyncpa [#allocation4], 1
    %1570 = vsyncpa [#allocation7], 1
    %1571 = vsyncpa [#allocation5], 1
    %1572 = vsyncpa [#allocation10], 1

</llo_original>
